<compile_context>
chip_gen: v6e
topology: v6e:2x2x1
jax: 0.10.0
libtpu: 0.0.40
codegen_flags: <defaults>
</compile_context>

<pallas_src>
import functools

import jax
import jax.numpy as jnp
from jax.experimental import pallas as pl
from jax.experimental.pallas import tpu as pltpu


# ----------------------------------------------------------------------------
# Pallas kernel: per-block (Bw windows) fused QKV -> attention -> output proj
# ----------------------------------------------------------------------------
def _msa_kernel(x_ref, wqkv_ref, bqkv_ref, wproj_ref, bproj_ref, bias_ref,
                o_ref, *, bw, num_heads, head_dim, N, C):
    # x block: (bw, N, C) bf16.  Flatten windows so both projections are one
    # large GEMM per grid step.
    x2d = x_ref[...].reshape(bw * N, C)                                # bf16

    # QKV projection (MXU, bf16 x bf16 -> f32 accum).  Scale is already folded
    # into the Q columns of wqkv / bqkv.
    qkv = jnp.dot(x2d, wqkv_ref[...],
                  preferred_element_type=jnp.float32) + bqkv_ref[...]  # (bw*N, 3C) f32

    head_outs = []
    for h in range(num_heads):                       # static unroll over heads
        lo = h * head_dim
        q = qkv[:, lo:lo + head_dim].reshape(bw, N, head_dim).astype(jnp.bfloat16)
        k = qkv[:, C + lo:C + lo + head_dim].reshape(bw, N, head_dim).astype(jnp.bfloat16)
        v = qkv[:, 2 * C + lo:2 * C + lo + head_dim].reshape(bw, N, head_dim).astype(jnp.bfloat16)

        # Batched (over windows) attention scores: (bw, N, N) in f32.
        attn = jnp.einsum("bnd,bmd->bnm", q, k,
                          preferred_element_type=jnp.float32)
        attn = attn + bias_ref[h][None, :, :]

        # Numerically stable softmax over the last axis (f32 on the VPU/EUP).
        attn = attn - jnp.max(attn, axis=-1, keepdims=True)
        p = jnp.exp(attn)
        p = p * pl.reciprocal(jnp.sum(p, axis=-1, keepdims=True), approx=True)
        # attn_drop is identity (p=0.0 / eval mode).

        o_h = jnp.einsum("bnm,bmd->bnd", p.astype(jnp.bfloat16), v,
                         preferred_element_type=jnp.float32)           # (bw, N, hd)
        head_outs.append(o_h.reshape(bw * N, head_dim))

    out = jnp.concatenate(head_outs, axis=-1)                          # (bw*N, C) f32

    # Output projection (MXU).  proj_drop is identity (p=0.0 / eval mode).
    y = jnp.dot(out.astype(jnp.bfloat16), wproj_ref[...],
                preferred_element_type=jnp.float32) + bproj_ref[...]
    o_ref[...] = y.reshape(bw, N, C).astype(o_ref.dtype)


# ----------------------------------------------------------------------------
# Wrapper (parameter plumbing + relative-position-bias gather are glue JAX)
# ----------------------------------------------------------------------------
def msa_forward(x, params, *, window_size, num_heads, windows_per_block=None):
    B_, N, C = x.shape
    assert N == window_size * window_size
    head_dim = C // num_heads
    scale = head_dim ** (-0.5)

    # Fold the 1/sqrt(head_dim) scale into the Q columns of Wqkv / bqkv.
    wqkv = params["wqkv"]                                  # (C, 3C)
    bqkv = params["bqkv"]                                  # (3C,)
    col_scale = jnp.concatenate(
        [jnp.full((C,), scale, dtype=wqkv.dtype),
         jnp.ones((2 * C,), dtype=wqkv.dtype)])
    wqkv_s = (wqkv * col_scale[None, :]).astype(jnp.bfloat16)
    bqkv_s = (bqkv * col_scale).reshape(1, 3 * C).astype(jnp.float32)
    wproj = params["wproj"].astype(jnp.bfloat16)           # (C, C)
    bproj = params["bproj"].reshape(1, C).astype(jnp.float32)
    table = params["rel_pos_bias_table"]                   # ((2w-1)^2, H)

    # relative_position_index (same construction as the PyTorch __init__).
    coords_h = jnp.arange(window_size)
    coords_w = jnp.arange(window_size)
    coords = jnp.stack(jnp.meshgrid(coords_h, coords_w, indexing="ij"))   # (2,w,w)
    coords_flat = coords.reshape(2, -1)                                   # (2,N)
    rel = coords_flat[:, :, None] - coords_flat[:, None, :]               # (2,N,N)
    rel = rel.transpose(1, 2, 0)                                          # (N,N,2)
    rel = rel.at[:, :, 0].add(window_size - 1)
    rel = rel.at[:, :, 1].add(window_size - 1)
    rel = rel.at[:, :, 0].multiply(2 * window_size - 1)
    rel_index = rel.sum(-1)                                               # (N,N)

    # Gather the bias (data-dependent gather stays in plain JAX).
    rel_bias = table[rel_index.reshape(-1)].reshape(N, N, num_heads)
    rel_bias = jnp.transpose(rel_bias, (2, 0, 1)).astype(jnp.float32)     # (H,N,N)

    # Choose how many windows to batch per grid step: aim for >=256 rows in
    # the projection GEMMs (v6e/v7x MXU is 2x256^2; >=128 covers v5e).
    if windows_per_block is None:
        windows_per_block = max(1, 256 // N)
    bw = max(1, min(windows_per_block, B_))
    pad = (-B_) % bw
    x_bf = x.astype(jnp.bfloat16)
    if pad:
        x_bf = jnp.concatenate(
            [x_bf, jnp.zeros((pad, N, C), jnp.bfloat16)], axis=0)
    num_blocks = (B_ + pad) // bw

    kernel = functools.partial(_msa_kernel, bw=bw, num_heads=num_heads,
                               head_dim=head_dim, N=N, C=C)

    # Grid over window blocks; weights / bias blocks are the full arrays
    # (last two dims equal the full array dims, so no (8,128) constraint).
    out = pl.pallas_call(
        kernel,
        out_shape=jax.ShapeDtypeStruct((num_blocks * bw, N, C), x.dtype),
        grid_spec=pltpu.PrefetchScalarGridSpec(
            num_scalar_prefetch=0,
            grid=(num_blocks,),
            in_specs=[
                pl.BlockSpec((bw, N, C), lambda b: (b, 0, 0)),         # x
                pl.BlockSpec((C, 3 * C), lambda b: (0, 0)),            # Wqkv (bf16)
                pl.BlockSpec((1, 3 * C), lambda b: (0, 0)),            # bqkv (f32)
                pl.BlockSpec((C, C), lambda b: (0, 0)),                # Wproj (bf16)
                pl.BlockSpec((1, C), lambda b: (0, 0)),                # bproj (f32)
                pl.BlockSpec((num_heads, N, N), lambda b: (0, 0, 0)),  # rel bias
            ],
            out_specs=pl.BlockSpec((bw, N, C), lambda b: (b, 0, 0)),
        ),
        compiler_params=pltpu.CompilerParams(
            dimension_semantics=("parallel",)),
    )(x_bf, wqkv_s, bqkv_s, wproj, bproj, rel_bias)

    if pad:
        out = out[:B_]
    return out


# ----------------------------------------------------------------------------
# Pure-JAX reference (mirrors the PyTorch forward) for a correctness check
# ----------------------------------------------------------------------------
def msa_reference(x, params, *, window_size, num_heads):
    B_, N, C = x.shape
    head_dim = C // num_heads
    scale = head_dim ** (-0.5)

    qkv = x @ params["wqkv"] + params["bqkv"]
    qkv = qkv.reshape(B_, N, 3, num_heads, head_dim).transpose(2, 0, 3, 1, 4)
    q, k, v = qkv[0], qkv[1], qkv[2]
    attn = jnp.einsum("bhnd,bhmd->bhnm", q, k) * scale

    coords = jnp.stack(jnp.meshgrid(jnp.arange(window_size),
                                    jnp.arange(window_size), indexing="ij"))
    cf = coords.reshape(2, -1)
    rel = (cf[:, :, None] - cf[:, None, :]).transpose(1, 2, 0)
    rel = rel.at[:, :, 0].add(window_size - 1)
    rel = rel.at[:, :, 1].add(window_size - 1)
    rel = rel.at[:, :, 0].multiply(2 * window_size - 1)
    idx = rel.sum(-1)
    bias = params["rel_pos_bias_table"][idx.reshape(-1)].reshape(N, N, num_heads)
    bias = jnp.transpose(bias, (2, 0, 1))

    attn = attn + bias[None]
    attn = jax.nn.softmax(attn, axis=-1)
    out = jnp.einsum("bhnm,bhmd->bhnd", attn, v)
    out = out.transpose(0, 2, 1, 3).reshape(B_, N, C)
    return out @ params["wproj"] + params["bproj"]


if __name__ == "__main__":
    # Small shapes consistent with the module: window_size=4 -> N=16,
    # dim=32, num_heads=4 (head_dim=8), B_=2 windows.
    window_size = 4
    dim = 32
    num_heads = 4
    B_ = 2
    N = window_size * window_size

    key = jax.random.PRNGKey(0)
    kx, k1, k2, k3, k4, k5 = jax.random.split(key, 6)

    x = jax.random.normal(kx, (B_, N, dim), dtype=jnp.float32)

    params = {
        "wqkv": jax.random.normal(k1, (dim, 3 * dim), jnp.float32) * 0.05,
        "bqkv": jax.random.normal(k2, (3 * dim,), jnp.float32) * 0.05,
        "wproj": jax.random.normal(k3, (dim, dim), jnp.float32) * 0.05,
        "bproj": jax.random.normal(k4, (dim,), jnp.float32) * 0.05,
        # trunc_normal_(std=0.02) approximated by a plain normal (deterministic).
        "rel_pos_bias_table": jax.random.normal(
            k5, ((2 * window_size - 1) ** 2, num_heads), jnp.float32) * 0.02,
    }

    out = msa_forward(x, params, window_size=window_size, num_heads=num_heads)
    out = jax.block_until_ready(out)

    ref = msa_reference(x, params, window_size=window_size, num_heads=num_heads)
    assert out.shape == (B_, N, dim)
    # Tolerance loosened for bf16 matmul operands (f32 accumulation) and the
    # approximate reciprocal in the softmax.
    assert jnp.allclose(out, ref, atol=2e-2, rtol=2e-2), "mismatch vs reference"

    print("KERNEL_OK")
</pallas_src>

<mosaic_0001>
module attributes {stable_mosaic.version = 11 : i64} {
  func.func @_msa_kernel(%arg0: i32, %arg1: memref<2x16x32xbf16, #tpu.memory_space<vmem>>, %arg2: memref<32x96xbf16, #tpu.memory_space<vmem>>, %arg3: memref<1x96xf32, #tpu.memory_space<vmem>>, %arg4: memref<32x32xbf16, #tpu.memory_space<vmem>>, %arg5: memref<1x32xf32, #tpu.memory_space<vmem>>, %arg6: memref<4x16x16xf32, #tpu.memory_space<vmem>>, %arg7: memref<2x16x32xf32, #tpu.memory_space<vmem>>) attributes {dimension_semantics = [#tpu.dimension_semantics<parallel>], iteration_bounds = array<i64: 1>, scalar_prefetch = 0 : i64, scratch_operands = 0 : i64, tpu.core_type = #tpu.core_type<tc>, window_params = [{transform_indices = @transform_0, window_bounds = array<i64: 2, 16, 32>}, {pipeline_mode = #tpu.pipeline_mode<synchronous>, transform_indices = @transform_1, window_bounds = array<i64: 32, 96>}, {pipeline_mode = #tpu.pipeline_mode<synchronous>, transform_indices = @transform_2, window_bounds = array<i64: 1, 96>}, {pipeline_mode = #tpu.pipeline_mode<synchronous>, transform_indices = @transform_3, window_bounds = array<i64: 32, 32>}, {pipeline_mode = #tpu.pipeline_mode<synchronous>, transform_indices = @transform_4, window_bounds = array<i64: 1, 32>}, {pipeline_mode = #tpu.pipeline_mode<synchronous>, transform_indices = @transform_5, window_bounds = array<i64: 4, 16, 16>}, {transform_indices = @transform_6, window_bounds = array<i64: 2, 16, 32>}]} {
    %c0 = arith.constant 0 : index
    %c0_0 = arith.constant 0 : index
    %c0_1 = arith.constant 0 : index
    %0 = vector.load %arg1[%c0, %c0_0, %c0_1] : memref<2x16x32xbf16, #tpu.memory_space<vmem>>, vector<2x16x32xbf16>
    %1 = vector.shape_cast %0 : vector<2x16x32xbf16> to vector<32x32xbf16>
    %c0_2 = arith.constant 0 : index
    %c0_3 = arith.constant 0 : index
    %2 = vector.load %arg2[%c0_2, %c0_3] : memref<32x96xbf16, #tpu.memory_space<vmem>>, vector<32x96xbf16>
    %cst = arith.constant dense<0.000000e+00> : vector<32x96xf32>
    %3 = tpu.matmul %1, %2, %cst {dimension_numbers = #tpu.dot_dimension_numbers<[1], [0], [0], [1], [0, 0, 1, 1], [], []>} : vector<32x32xbf16>, vector<32x96xbf16>, vector<32x96xf32> -> vector<32x96xf32>
    %c0_4 = arith.constant 0 : index
    %c0_5 = arith.constant 0 : index
    %4 = vector.load %arg3[%c0_4, %c0_5] : memref<1x96xf32, #tpu.memory_space<vmem>>, vector<1x96xf32>
    %5 = vector.broadcast %4 : vector<1x96xf32> to vector<32x96xf32>
    %6 = arith.addf %3, %5 : vector<32x96xf32>
    %7 = vector.extract_strided_slice %6 {offsets = [0, 0], sizes = [32, 8], strides = [1, 1]} : vector<32x96xf32> to vector<32x8xf32>
    %8 = vector.shape_cast %7 : vector<32x8xf32> to vector<2x16x8xf32>
    %9 = arith.truncf %8 : vector<2x16x8xf32> to vector<2x16x8xbf16>
    %10 = vector.extract_strided_slice %6 {offsets = [0, 32], sizes = [32, 8], strides = [1, 1]} : vector<32x96xf32> to vector<32x8xf32>
    %11 = vector.shape_cast %10 : vector<32x8xf32> to vector<2x16x8xf32>
    %12 = arith.truncf %11 : vector<2x16x8xf32> to vector<2x16x8xbf16>
    %13 = vector.extract_strided_slice %6 {offsets = [0, 64], sizes = [32, 8], strides = [1, 1]} : vector<32x96xf32> to vector<32x8xf32>
    %14 = vector.shape_cast %13 : vector<32x8xf32> to vector<2x16x8xf32>
    %15 = arith.truncf %14 : vector<2x16x8xf32> to vector<2x16x8xbf16>
    "tpu.trace_start"() <{level = 10 : i32, message = "bnd,bmd->bnm"}> : () -> ()
    %cst_6 = arith.constant dense<0.000000e+00> : vector<2x16x16xf32>
    %16 = tpu.matmul %9, %12, %cst_6 {dimension_numbers = #tpu.dot_dimension_numbers<[2], [2], [1], [1], [0, 0, 0, 1, 1, 1], [0], [0]>} : vector<2x16x8xbf16>, vector<2x16x8xbf16>, vector<2x16x16xf32> -> vector<2x16x16xf32>
    "tpu.trace_stop"() : () -> ()
    %c0_7 = arith.constant 0 : index
    %c0_8 = arith.constant 0 : index
    %c0_9 = arith.constant 0 : index
    %17 = vector.load %arg6[%c0_7, %c0_8, %c0_9] : memref<4x16x16xf32, #tpu.memory_space<vmem>>, vector<1x16x16xf32>
    %18 = vector.shape_cast %17 : vector<1x16x16xf32> to vector<16x16xf32>
    %19 = vector.shape_cast %18 : vector<16x16xf32> to vector<1x16x16xf32>
    %20 = vector.broadcast %19 : vector<1x16x16xf32> to vector<2x16x16xf32>
    %21 = arith.addf %16, %20 : vector<2x16x16xf32>
    %cst_10 = arith.constant dense<0xFF800000> : vector<2x16xf32>
    %22 = vector.multi_reduction <maximumf>, %21, %cst_10 [2] : vector<2x16x16xf32> to vector<2x16xf32>
    %23 = vector.shape_cast %22 : vector<2x16xf32> to vector<2x16x1xf32>
    %24 = vector.broadcast %23 : vector<2x16x1xf32> to vector<2x16x16xf32>
    %25 = arith.subf %21, %24 : vector<2x16x16xf32>
    %26 = math.exp %25 : vector<2x16x16xf32>
    %cst_11 = arith.constant dense<0.000000e+00> : vector<2x16xf32>
    %27 = vector.multi_reduction <add>, %26, %cst_11 [2] : vector<2x16x16xf32> to vector<2x16xf32>
    %28 = vector.shape_cast %27 : vector<2x16xf32> to vector<2x16x1xf32>
    %29 = tpu.reciprocal %28 {approx = true} : vector<2x16x1xf32> -> vector<2x16x1xf32>
    %30 = vector.broadcast %29 : vector<2x16x1xf32> to vector<2x16x16xf32>
    %31 = arith.mulf %26, %30 : vector<2x16x16xf32>
    %32 = arith.truncf %31 : vector<2x16x16xf32> to vector<2x16x16xbf16>
    "tpu.trace_start"() <{level = 10 : i32, message = "bnm,bmd->bnd"}> : () -> ()
    %cst_12 = arith.constant dense<0.000000e+00> : vector<2x16x8xf32>
    %33 = tpu.matmul %32, %15, %cst_12 {dimension_numbers = #tpu.dot_dimension_numbers<[2], [1], [1], [2], [0, 0, 0, 1, 1, 2], [0], [0]>} : vector<2x16x16xbf16>, vector<2x16x8xbf16>, vector<2x16x8xf32> -> vector<2x16x8xf32>
    "tpu.trace_stop"() : () -> ()
    %34 = vector.shape_cast %33 : vector<2x16x8xf32> to vector<32x8xf32>
    %35 = vector.extract_strided_slice %6 {offsets = [0, 8], sizes = [32, 8], strides = [1, 1]} : vector<32x96xf32> to vector<32x8xf32>
    %36 = vector.shape_cast %35 : vector<32x8xf32> to vector<2x16x8xf32>
    %37 = arith.truncf %36 : vector<2x16x8xf32> to vector<2x16x8xbf16>
    %38 = vector.extract_strided_slice %6 {offsets = [0, 40], sizes = [32, 8], strides = [1, 1]} : vector<32x96xf32> to vector<32x8xf32>
    %39 = vector.shape_cast %38 : vector<32x8xf32> to vector<2x16x8xf32>
    %40 = arith.truncf %39 : vector<2x16x8xf32> to vector<2x16x8xbf16>
    %41 = vector.extract_strided_slice %6 {offsets = [0, 72], sizes = [32, 8], strides = [1, 1]} : vector<32x96xf32> to vector<32x8xf32>
    %42 = vector.shape_cast %41 : vector<32x8xf32> to vector<2x16x8xf32>
    %43 = arith.truncf %42 : vector<2x16x8xf32> to vector<2x16x8xbf16>
    "tpu.trace_start"() <{level = 10 : i32, message = "bnd,bmd->bnm"}> : () -> ()
    %cst_13 = arith.constant dense<0.000000e+00> : vector<2x16x16xf32>
    %44 = tpu.matmul %37, %40, %cst_13 {dimension_numbers = #tpu.dot_dimension_numbers<[2], [2], [1], [1], [0, 0, 0, 1, 1, 1], [0], [0]>} : vector<2x16x8xbf16>, vector<2x16x8xbf16>, vector<2x16x16xf32> -> vector<2x16x16xf32>
    "tpu.trace_stop"() : () -> ()
    %c1 = arith.constant 1 : index
    %c0_14 = arith.constant 0 : index
    %c0_15 = arith.constant 0 : index
    %45 = vector.load %arg6[%c1, %c0_14, %c0_15] : memref<4x16x16xf32, #tpu.memory_space<vmem>>, vector<1x16x16xf32>
    %46 = vector.shape_cast %45 : vector<1x16x16xf32> to vector<16x16xf32>
    %47 = vector.shape_cast %46 : vector<16x16xf32> to vector<1x16x16xf32>
    %48 = vector.broadcast %47 : vector<1x16x16xf32> to vector<2x16x16xf32>
    %49 = arith.addf %44, %48 : vector<2x16x16xf32>
    %cst_16 = arith.constant dense<0xFF800000> : vector<2x16xf32>
    %50 = vector.multi_reduction <maximumf>, %49, %cst_16 [2] : vector<2x16x16xf32> to vector<2x16xf32>
    %51 = vector.shape_cast %50 : vector<2x16xf32> to vector<2x16x1xf32>
    %52 = vector.broadcast %51 : vector<2x16x1xf32> to vector<2x16x16xf32>
    %53 = arith.subf %49, %52 : vector<2x16x16xf32>
    %54 = math.exp %53 : vector<2x16x16xf32>
    %cst_17 = arith.constant dense<0.000000e+00> : vector<2x16xf32>
    %55 = vector.multi_reduction <add>, %54, %cst_17 [2] : vector<2x16x16xf32> to vector<2x16xf32>
    %56 = vector.shape_cast %55 : vector<2x16xf32> to vector<2x16x1xf32>
    %57 = tpu.reciprocal %56 {approx = true} : vector<2x16x1xf32> -> vector<2x16x1xf32>
    %58 = vector.broadcast %57 : vector<2x16x1xf32> to vector<2x16x16xf32>
    %59 = arith.mulf %54, %58 : vector<2x16x16xf32>
    %60 = arith.truncf %59 : vector<2x16x16xf32> to vector<2x16x16xbf16>
    "tpu.trace_start"() <{level = 10 : i32, message = "bnm,bmd->bnd"}> : () -> ()
    %cst_18 = arith.constant dense<0.000000e+00> : vector<2x16x8xf32>
    %61 = tpu.matmul %60, %43, %cst_18 {dimension_numbers = #tpu.dot_dimension_numbers<[2], [1], [1], [2], [0, 0, 0, 1, 1, 2], [0], [0]>} : vector<2x16x16xbf16>, vector<2x16x8xbf16>, vector<2x16x8xf32> -> vector<2x16x8xf32>
    "tpu.trace_stop"() : () -> ()
    %62 = vector.shape_cast %61 : vector<2x16x8xf32> to vector<32x8xf32>
    %63 = vector.extract_strided_slice %6 {offsets = [0, 16], sizes = [32, 8], strides = [1, 1]} : vector<32x96xf32> to vector<32x8xf32>
    %64 = vector.shape_cast %63 : vector<32x8xf32> to vector<2x16x8xf32>
    %65 = arith.truncf %64 : vector<2x16x8xf32> to vector<2x16x8xbf16>
    %66 = vector.extract_strided_slice %6 {offsets = [0, 48], sizes = [32, 8], strides = [1, 1]} : vector<32x96xf32> to vector<32x8xf32>
    %67 = vector.shape_cast %66 : vector<32x8xf32> to vector<2x16x8xf32>
    %68 = arith.truncf %67 : vector<2x16x8xf32> to vector<2x16x8xbf16>
    %69 = vector.extract_strided_slice %6 {offsets = [0, 80], sizes = [32, 8], strides = [1, 1]} : vector<32x96xf32> to vector<32x8xf32>
    %70 = vector.shape_cast %69 : vector<32x8xf32> to vector<2x16x8xf32>
    %71 = arith.truncf %70 : vector<2x16x8xf32> to vector<2x16x8xbf16>
    "tpu.trace_start"() <{level = 10 : i32, message = "bnd,bmd->bnm"}> : () -> ()
    %cst_19 = arith.constant dense<0.000000e+00> : vector<2x16x16xf32>
    %72 = tpu.matmul %65, %68, %cst_19 {dimension_numbers = #tpu.dot_dimension_numbers<[2], [2], [1], [1], [0, 0, 0, 1, 1, 1], [0], [0]>} : vector<2x16x8xbf16>, vector<2x16x8xbf16>, vector<2x16x16xf32> -> vector<2x16x16xf32>
    "tpu.trace_stop"() : () -> ()
    %c2 = arith.constant 2 : index
    %c0_20 = arith.constant 0 : index
    %c0_21 = arith.constant 0 : index
    %73 = vector.load %arg6[%c2, %c0_20, %c0_21] : memref<4x16x16xf32, #tpu.memory_space<vmem>>, vector<1x16x16xf32>
    %74 = vector.shape_cast %73 : vector<1x16x16xf32> to vector<16x16xf32>
    %75 = vector.shape_cast %74 : vector<16x16xf32> to vector<1x16x16xf32>
    %76 = vector.broadcast %75 : vector<1x16x16xf32> to vector<2x16x16xf32>
    %77 = arith.addf %72, %76 : vector<2x16x16xf32>
    %cst_22 = arith.constant dense<0xFF800000> : vector<2x16xf32>
    %78 = vector.multi_reduction <maximumf>, %77, %cst_22 [2] : vector<2x16x16xf32> to vector<2x16xf32>
    %79 = vector.shape_cast %78 : vector<2x16xf32> to vector<2x16x1xf32>
    %80 = vector.broadcast %79 : vector<2x16x1xf32> to vector<2x16x16xf32>
    %81 = arith.subf %77, %80 : vector<2x16x16xf32>
    %82 = math.exp %81 : vector<2x16x16xf32>
    %cst_23 = arith.constant dense<0.000000e+00> : vector<2x16xf32>
    %83 = vector.multi_reduction <add>, %82, %cst_23 [2] : vector<2x16x16xf32> to vector<2x16xf32>
    %84 = vector.shape_cast %83 : vector<2x16xf32> to vector<2x16x1xf32>
    %85 = tpu.reciprocal %84 {approx = true} : vector<2x16x1xf32> -> vector<2x16x1xf32>
    %86 = vector.broadcast %85 : vector<2x16x1xf32> to vector<2x16x16xf32>
    %87 = arith.mulf %82, %86 : vector<2x16x16xf32>
    %88 = arith.truncf %87 : vector<2x16x16xf32> to vector<2x16x16xbf16>
    "tpu.trace_start"() <{level = 10 : i32, message = "bnm,bmd->bnd"}> : () -> ()
    %cst_24 = arith.constant dense<0.000000e+00> : vector<2x16x8xf32>
    %89 = tpu.matmul %88, %71, %cst_24 {dimension_numbers = #tpu.dot_dimension_numbers<[2], [1], [1], [2], [0, 0, 0, 1, 1, 2], [0], [0]>} : vector<2x16x16xbf16>, vector<2x16x8xbf16>, vector<2x16x8xf32> -> vector<2x16x8xf32>
    "tpu.trace_stop"() : () -> ()
    %90 = vector.shape_cast %89 : vector<2x16x8xf32> to vector<32x8xf32>
    %91 = vector.extract_strided_slice %6 {offsets = [0, 24], sizes = [32, 8], strides = [1, 1]} : vector<32x96xf32> to vector<32x8xf32>
    %92 = vector.shape_cast %91 : vector<32x8xf32> to vector<2x16x8xf32>
    %93 = arith.truncf %92 : vector<2x16x8xf32> to vector<2x16x8xbf16>
    %94 = vector.extract_strided_slice %6 {offsets = [0, 56], sizes = [32, 8], strides = [1, 1]} : vector<32x96xf32> to vector<32x8xf32>
    %95 = vector.shape_cast %94 : vector<32x8xf32> to vector<2x16x8xf32>
    %96 = arith.truncf %95 : vector<2x16x8xf32> to vector<2x16x8xbf16>
    %97 = vector.extract_strided_slice %6 {offsets = [0, 88], sizes = [32, 8], strides = [1, 1]} : vector<32x96xf32> to vector<32x8xf32>
    %98 = vector.shape_cast %97 : vector<32x8xf32> to vector<2x16x8xf32>
    %99 = arith.truncf %98 : vector<2x16x8xf32> to vector<2x16x8xbf16>
    "tpu.trace_start"() <{level = 10 : i32, message = "bnd,bmd->bnm"}> : () -> ()
    %cst_25 = arith.constant dense<0.000000e+00> : vector<2x16x16xf32>
    %100 = tpu.matmul %93, %96, %cst_25 {dimension_numbers = #tpu.dot_dimension_numbers<[2], [2], [1], [1], [0, 0, 0, 1, 1, 1], [0], [0]>} : vector<2x16x8xbf16>, vector<2x16x8xbf16>, vector<2x16x16xf32> -> vector<2x16x16xf32>
    "tpu.trace_stop"() : () -> ()
    %c3 = arith.constant 3 : index
    %c0_26 = arith.constant 0 : index
    %c0_27 = arith.constant 0 : index
    %101 = vector.load %arg6[%c3, %c0_26, %c0_27] : memref<4x16x16xf32, #tpu.memory_space<vmem>>, vector<1x16x16xf32>
    %102 = vector.shape_cast %101 : vector<1x16x16xf32> to vector<16x16xf32>
    %103 = vector.shape_cast %102 : vector<16x16xf32> to vector<1x16x16xf32>
    %104 = vector.broadcast %103 : vector<1x16x16xf32> to vector<2x16x16xf32>
    %105 = arith.addf %100, %104 : vector<2x16x16xf32>
    %cst_28 = arith.constant dense<0xFF800000> : vector<2x16xf32>
    %106 = vector.multi_reduction <maximumf>, %105, %cst_28 [2] : vector<2x16x16xf32> to vector<2x16xf32>
    %107 = vector.shape_cast %106 : vector<2x16xf32> to vector<2x16x1xf32>
    %108 = vector.broadcast %107 : vector<2x16x1xf32> to vector<2x16x16xf32>
    %109 = arith.subf %105, %108 : vector<2x16x16xf32>
    %110 = math.exp %109 : vector<2x16x16xf32>
    %cst_29 = arith.constant dense<0.000000e+00> : vector<2x16xf32>
    %111 = vector.multi_reduction <add>, %110, %cst_29 [2] : vector<2x16x16xf32> to vector<2x16xf32>
    %112 = vector.shape_cast %111 : vector<2x16xf32> to vector<2x16x1xf32>
    %113 = tpu.reciprocal %112 {approx = true} : vector<2x16x1xf32> -> vector<2x16x1xf32>
    %114 = vector.broadcast %113 : vector<2x16x1xf32> to vector<2x16x16xf32>
    %115 = arith.mulf %110, %114 : vector<2x16x16xf32>
    %116 = arith.truncf %115 : vector<2x16x16xf32> to vector<2x16x16xbf16>
    "tpu.trace_start"() <{level = 10 : i32, message = "bnm,bmd->bnd"}> : () -> ()
    %cst_30 = arith.constant dense<0.000000e+00> : vector<2x16x8xf32>
    %117 = tpu.matmul %116, %99, %cst_30 {dimension_numbers = #tpu.dot_dimension_numbers<[2], [1], [1], [2], [0, 0, 0, 1, 1, 2], [0], [0]>} : vector<2x16x16xbf16>, vector<2x16x8xbf16>, vector<2x16x8xf32> -> vector<2x16x8xf32>
    "tpu.trace_stop"() : () -> ()
    %118 = vector.shape_cast %117 : vector<2x16x8xf32> to vector<32x8xf32>
    %119 = tpu.concatenate %34, %62, %90, %118 in 1 : vector<32x8xf32>, vector<32x8xf32>, vector<32x8xf32>, vector<32x8xf32> -> vector<32x32xf32>
    %120 = arith.truncf %119 : vector<32x32xf32> to vector<32x32xbf16>
    %c0_31 = arith.constant 0 : index
    %c0_32 = arith.constant 0 : index
    %121 = vector.load %arg4[%c0_31, %c0_32] : memref<32x32xbf16, #tpu.memory_space<vmem>>, vector<32x32xbf16>
    %cst_33 = arith.constant dense<0.000000e+00> : vector<32x32xf32>
    %122 = tpu.matmul %120, %121, %cst_33 {dimension_numbers = #tpu.dot_dimension_numbers<[1], [0], [0], [1], [0, 0, 1, 1], [], []>} : vector<32x32xbf16>, vector<32x32xbf16>, vector<32x32xf32> -> vector<32x32xf32>
    %c0_34 = arith.constant 0 : index
    %c0_35 = arith.constant 0 : index
    %123 = vector.load %arg5[%c0_34, %c0_35] : memref<1x32xf32, #tpu.memory_space<vmem>>, vector<1x32xf32>
    %124 = vector.broadcast %123 : vector<1x32xf32> to vector<32x32xf32>
    %125 = arith.addf %122, %124 : vector<32x32xf32>
    %126 = vector.shape_cast %125 : vector<32x32xf32> to vector<2x16x32xf32>
    %c0_36 = arith.constant 0 : index
    %c0_37 = arith.constant 0 : index
    %c0_38 = arith.constant 0 : index
    %127 = vector.load %arg7[%c0_36, %c0_37, %c0_38] : memref<2x16x32xf32, #tpu.memory_space<vmem>>, vector<2x16x32xf32>
    tpu.vector_store %arg7[%c0_36, %c0_37, %c0_38], %126 {strides = array<i32>} : memref<2x16x32xf32, #tpu.memory_space<vmem>>, vector<2x16x32xf32>,
    return
  }
  func.func @transform_0(%arg0: i32) -> (i32, i32, i32) {
    %c0_i32 = arith.constant 0 : i32
    %c0_i32_0 = arith.constant 0 : i32
    %c0_i32_1 = arith.constant 0 : i32
    return %arg0, %c0_i32, %c0_i32_0 : i32, i32, i32
  }
  func.func @transform_1(%arg0: i32) -> (i32, i32) {
    %c0_i32 = arith.constant 0 : i32
    %c0_i32_0 = arith.constant 0 : i32
    %c0_i32_1 = arith.constant 0 : i32
    return %c0_i32, %c0_i32_0 : i32, i32
  }
  func.func @transform_2(%arg0: i32) -> (i32, i32) {
    %c0_i32 = arith.constant 0 : i32
    %c0_i32_0 = arith.constant 0 : i32
    %c0_i32_1 = arith.constant 0 : i32
    return %c0_i32, %c0_i32_0 : i32, i32
  }
  func.func @transform_3(%arg0: i32) -> (i32, i32) {
    %c0_i32 = arith.constant 0 : i32
    %c0_i32_0 = arith.constant 0 : i32
    %c0_i32_1 = arith.constant 0 : i32
    return %c0_i32, %c0_i32_0 : i32, i32
  }
  func.func @transform_4(%arg0: i32) -> (i32, i32) {
    %c0_i32 = arith.constant 0 : i32
    %c0_i32_0 = arith.constant 0 : i32
    %c0_i32_1 = arith.constant 0 : i32
    return %c0_i32, %c0_i32_0 : i32, i32
  }
  func.func @transform_5(%arg0: i32) -> (i32, i32, i32) {
    %c0_i32 = arith.constant 0 : i32
    %c0_i32_0 = arith.constant 0 : i32
    %c0_i32_1 = arith.constant 0 : i32
    %c0_i32_2 = arith.constant 0 : i32
    return %c0_i32, %c0_i32_0, %c0_i32_1 : i32, i32, i32
  }
  func.func @transform_6(%arg0: i32) -> (i32, i32, i32) {
    %c0_i32 = arith.constant 0 : i32
    %c0_i32_0 = arith.constant 0 : i32
    %c0_i32_1 = arith.constant 0 : i32
    return %arg0, %c0_i32, %c0_i32_0 : i32, i32, i32
  }
}

</mosaic_0001>

<llo_original>
// kernel: tpu_custom_call.1
$region0: #{tpu_custom_call.1}
  #allocation0 [shape = 'u32[]', space=smem, size = 0x4, offset = 0x4, fixed_abs, tag = 'smem constant byte address 0x4 - core index']
  #allocation1 [shape = 'u32[144,128]{1,0:T(1,128)}', space=vmem, size = 0x12000, scoped, tag = 'internal scratch']
  %s0 = inlined_call_operand.hbm [shape: bf16[2,16,32], index: 0, kind: input, shape index: {}]
  %s1 = inlined_call_operand.hbm [shape: bf16[32,96], index: 1, kind: input, shape index: {}]
  %s2 = inlined_call_operand.vmem [shape: f32[1,96], index: 2, kind: input, shape index: {}]
  %s3 = inlined_call_operand.hbm [shape: bf16[32,32], index: 3, kind: input, shape index: {}]
  %s4 = inlined_call_operand.vmem [shape: f32[1,32], index: 4, kind: input, shape index: {}]
  %s5 = inlined_call_operand.hbm [shape: f32[4,16,16], index: 5, kind: input, shape index: {}]
  %s6 = inlined_call_operand.hbm [shape: f32[2,16,32], index: 6, kind: output, shape index: {}]
  %s7 = sld [smem:[#allocation0]]
  $region50: #{tpu_custom_call.1} parent=0
    _
  %s9 = ssub.s32 1, %s7
  %s10 = scalar_select 0, %s9, %s7
  $region1: #{tpu_custom_call.1} parent=0
    #allocation2 [shape = 'u8[8192]{0}', space=vmem, size = 0x2000, scoped, tag = 'input window, operand 0, single buffered']
    #allocation3 [shape = 's32[1]{0}', space=sflag, size = 0x4, scoped, tag = 'scoped memory for tpu_custom_call.1']
    #allocation4 [shape = 's32[1]{0}', space=sflag, size = 0x4, scoped, tag = 'scoped memory for tpu_custom_call.1']
    #allocation5 [shape = 'u8[8192]{0}', space=vmem, size = 0x2000, scoped, tag = 'input window, operand 1, single buffered']
    #allocation6 [shape = 's32[1]{0}', space=sflag, size = 0x4, scoped, tag = 'scoped memory for tpu_custom_call.1']
    #allocation7 [shape = 'u8[8192]{0}', space=vmem, size = 0x2000, scoped, tag = 'input window, operand 3, single buffered']
    #allocation8 [shape = 'u8[32768]{0}', space=vmem, size = 0x8000, scoped, tag = 'input window, operand 5, single buffered']
    #allocation9 [shape = 's32[1]{0}', space=sflag, size = 0x4, scoped, tag = 'scoped memory for tpu_custom_call.1']
    #allocation10 [shape = 'u8[16384]{0}', space=vmem, size = 0x4000, scoped, tag = 'output window, operand 0, single buffered']
    %11 = vsyncpa [#allocation3], 0
    %12 = vsyncpa [#allocation6], 0
    %13 = vsyncpa [#allocation9], 0
    %14 = vsyncpa [#allocation4], 0
    // Predicated region
    $region2: #{tpu_custom_call.1} parent=1 // pred_check
      _
    $region3: #{tpu_custom_call.1} parent=1 // pred_check_branch
      %16 = sbr.rel (0) target = $region5
    $region4: #{tpu_custom_call.1} parent=1 // pred_region
      %s18 = ssub.s32 256, 256
      %19 = vsyncadd [#allocation3], %s18
      %s20 = sshll.u32 [#allocation2], 4
      %s21 = int_to_ptr.vmem [resolvable:$true] %s20
      %26 = dma.hbm_to_vmem [thread:$0]  %s0, 256, %s21, [#allocation3], 64, 64, 4
    $region5: #{tpu_custom_call.1} parent=1 // pred_fallthru
      _
    // Predicated region
    $region6: #{tpu_custom_call.1} parent=1 // pred_check
      _
    $region7: #{tpu_custom_call.1} parent=1 // pred_check_branch
      %28 = sbr.rel (0) target = $region9
    $region8: #{tpu_custom_call.1} parent=1 // pred_region
      %s30 = ssub.s32 256, 256
      %31 = vsyncadd [#allocation6], %s30
      %s32 = sshll.u32 [#allocation5], 4
      %s33 = int_to_ptr.vmem [resolvable:$true] %s32
      %38 = dma.hbm_to_vmem [thread:$0]  %s1, 256, %s33, [#allocation6], 64, 64, 4
    $region9: #{tpu_custom_call.1} parent=1 // pred_fallthru
      _
    // Predicated region
    $region10: #{tpu_custom_call.1} parent=1 // pred_check
      _
    $region11: #{tpu_custom_call.1} parent=1 // pred_check_branch
      %40 = sbr.rel (0) target = $region13
    $region12: #{tpu_custom_call.1} parent=1 // pred_region
      _
    $region13: #{tpu_custom_call.1} parent=1 // pred_fallthru
      _
    // Predicated region
    $region14: #{tpu_custom_call.1} parent=1 // pred_check
      _
    $region15: #{tpu_custom_call.1} parent=1 // pred_check_branch
      %42 = sbr.rel (0) target = $region17
    $region16: #{tpu_custom_call.1} parent=1 // pred_region
      %s44 = ssub.s32 256, 256
      %45 = vsyncadd [#allocation6], %s44
      %s46 = sshll.u32 [#allocation7], 4
      %s47 = int_to_ptr.vmem [resolvable:$true] %s46
      %52 = dma.hbm_to_vmem [thread:$0]  %s3, 256, %s47, [#allocation6], 64, 64, 4
    $region17: #{tpu_custom_call.1} parent=1 // pred_fallthru
      _
    // Predicated region
    $region18: #{tpu_custom_call.1} parent=1 // pred_check
      _
    $region19: #{tpu_custom_call.1} parent=1 // pred_check_branch
      %54 = sbr.rel (0) target = $region21
    $region20: #{tpu_custom_call.1} parent=1 // pred_region
      _
    $region21: #{tpu_custom_call.1} parent=1 // pred_fallthru
      _
    // Predicated region
    $region22: #{tpu_custom_call.1} parent=1 // pred_check
      _
    $region23: #{tpu_custom_call.1} parent=1 // pred_check_branch
      %56 = sbr.rel (0) target = $region25
    $region24: #{tpu_custom_call.1} parent=1 // pred_region
      %s58 = ssub.s32 1024, 1024
      %59 = vsyncadd [#allocation9], %s58
      %s60 = sshll.u32 [#allocation8], 4
      %s61 = int_to_ptr.vmem [resolvable:$true] %s60
      %66 = dma.hbm_to_vmem [thread:$0]  %s5, 1024, %s61, [#allocation9], 128, 128, 8
    $region25: #{tpu_custom_call.1} parent=1 // pred_fallthru
      _
    // Predicated region
    $region26: #{tpu_custom_call.1} parent=1 // pred_check
      _
    $region27: #{tpu_custom_call.1} parent=1 // pred_check_branch
      %68 = sbr.rel (0) target = $region29
    $region28: #{tpu_custom_call.1} parent=1 // pred_region
      %69 = dma.done [#allocation3], 256
    $region29: #{tpu_custom_call.1} parent=1 // pred_fallthru
      _
    // Predicated region
    $region30: #{tpu_custom_call.1} parent=1 // pred_check
      _
    $region31: #{tpu_custom_call.1} parent=1 // pred_check_branch
      %71 = sbr.rel (0) target = $region33
    $region32: #{tpu_custom_call.1} parent=1 // pred_region
      %72 = dma.done [#allocation6], 256
    $region33: #{tpu_custom_call.1} parent=1 // pred_fallthru
      _
    // Predicated region
    $region34: #{tpu_custom_call.1} parent=1 // pred_check
      _
    $region35: #{tpu_custom_call.1} parent=1 // pred_check_branch
      %74 = sbr.rel (0) target = $region37
    $region36: #{tpu_custom_call.1} parent=1 // pred_region
      %75 = dma.done [#allocation6], 256
    $region37: #{tpu_custom_call.1} parent=1 // pred_fallthru
      _
    // Predicated region
    $region38: #{tpu_custom_call.1} parent=1 // pred_check
      _
    $region39: #{tpu_custom_call.1} parent=1 // pred_check_branch
      %77 = sbr.rel (0) target = $region41
    $region40: #{tpu_custom_call.1} parent=1 // pred_region
      %78 = dma.done [#allocation9], 1024
    $region41: #{tpu_custom_call.1} parent=1 // pred_fallthru
      _
    %v80 = vld [vmem:[#allocation2] sm:$0xf]
    %v81 = vld [vmem:[#allocation2 + $0x4] sm:$0xf]
    %v82 = vld [vmem:[#allocation2 + $0x8] sm:$0xf]
    %v83 = vld [vmem:[#allocation2 + $0xc] sm:$0xf]
    %v84 = vld [vmem:[#allocation5] sm:$0xf]
    %v85 = vld [vmem:[#allocation5 + $0x4] sm:$0xf]
    %v86 = vld [vmem:[#allocation5 + $0x8] sm:$0xf]
    %v87 = vld [vmem:[#allocation5 + $0xc] sm:$0xf]
    %v88 = vld [vmem:[%s2] sm:$0x1]
    %v90 = vlaneseq
    %v91 = vshrl.u32 %v90, 7
    %v92 = vsub.s32 0, %v91
    %v93 = vrot.slane %v88, %v92
    %v99 = vunpack.c.l.b16 %v80
    %v100 = vunpack.c.l.b16 %v81
    %v101 = vunpack.c.l.b16 %v82
    %v102 = vunpack.c.l.b16 %v83
    %v103 = vpack.c.b16 %v100, %v99
    %v104 = vpack.c.b16 %v102, %v101
    %v109 = vunpack.c.l.b16 %v84
    %v110 = vunpack.c.l.b16 %v85
    %v111 = vunpack.c.l.b16 %v86
    %v112 = vunpack.c.l.b16 %v87
    %v113 = vpack.c.b16 %v110, %v109
    %v114 = vpack.c.b16 %v112, %v111
    %vm117 = vcmask 261120
    %v119 = vsel %vm117, %v103, 0
    %v122 = vsel %vm117, %v104, 0
    %124 = vmatprep.subr.bf16.mxu0 0
    %125 = vmatpush1.bf16.msra.mxu0 0
    %126 = vmatprep.subr.bf16.mxu0 0
    %127 = vmatpush1.bf16.msra.mxu0 0
    %128 = vmatprep.subr.bf16.mxu0 0
    %129 = vmatpush1.bf16.msra.mxu0 0
    %130 = vmatprep.subr.bf16.mxu0 0
    %131 = vmatpush1.bf16.msra.mxu0 0
    %132 = vmatprep.subr.bf16.mxu0 0
    %133 = vmatpush1.bf16.msra.mxu0 0
    %134 = vmatprep.subr.bf16.mxu0 0
    %135 = vmatpush1.bf16.msra.mxu0 0
    %136 = vmatprep.subr.bf16.mxu0 0
    %137 = vmatpush1.bf16.msra.mxu0 %v114
    %138 = vmatprep.subr.bf16.mxu0 0
    %139 = vmatpush1.bf16.msra.mxu0 %v113
    %140 = vmatprep.subr.bf16.mxu0 0
    %141 = vmatpush2.bf16.msra.mxu0 0
    %142 = vmatprep.subr.bf16.mxu0 0
    %143 = vmatpush2.bf16.msra.mxu0 0
    %144 = vmatprep.subr.bf16.mxu0 0
    %145 = vmatpush2.bf16.msra.mxu0 0
    %146 = vmatprep.subr.bf16.mxu0 0
    %147 = vmatpush2.bf16.msra.mxu0 0
    %148 = vmatprep.subr.bf16.mxu0 0
    %149 = vmatpush2.bf16.msra.mxu0 0
    %150 = vmatprep.subr.bf16.mxu0 0
    %151 = vmatpush2.bf16.msra.mxu0 0
    %152 = vmatprep.subr.bf16.mxu0 0
    %153 = vmatpush2.bf16.msra.mxu0 0
    %154 = vmatprep.subr.bf16.mxu0 0
    %155 = vmatpush2.bf16.msra.mxu0 0
    %156 = vmatprep.mubr.bf16.mxu0 0
    %157 = vmatmul.mubr.bf16.gmra.mxu0 %v119
    %v158 = vpop.f32.mrf.mxu0
    %v159 = vadd.f32 %v93, %v158
    %v160 = vpop.f32.mrf.mxu0
    %v161 = vpop.f32.mrf.mxu0
    %v162 = vadd.f32 %v93, %v161
    %v163 = vpop.f32.mrf.mxu0
    %164 = vmatprep.mubr.bf16.mxu0 0
    %165 = vmatmul.mubr.bf16.gmra.mxu0 %v122
    %v166 = vpop.f32.mrf.mxu0
    %v167 = vadd.f32 %v93, %v166
    %v168 = vpop.f32.mrf.mxu0
    %v169 = vpop.f32.mrf.mxu0
    %v170 = vadd.f32 %v93, %v169
    %v171 = vpop.f32.mrf.mxu0
    %172 = vdwg.mxu0
    %v173 = vpack.c.bf16 %v162, %v159
    %v174 = vpack.c.bf16 %v170, %v167
    %v175 = vld [vmem:[#allocation8] sm:$0xff]
    %v176 = vld [vmem:[#allocation8 + $0x8] sm:$0xff]
    %178 = vrot.lane.b32.xlu0 %v173, 96
    %v179 = vpop.permute.xlu0 %178
    %vm180 = vcmask 64512
    %v182 = vsel %vm180, %v173, 0
    %v185 = vsel %vm180, %v179, 0
    %187 = vmatprep.subr.bf16.mxu0 0
    %188 = vmatpush1.bf16.xpose.msra.mxu0 0
    %189 = vmatprep.subr.bf16.mxu0 0
    %190 = vmatpush1.bf16.xpose.msra.mxu0 0
    %191 = vmatprep.subr.bf16.mxu0 0
    %192 = vmatpush1.bf16.xpose.msra.mxu0 0
    %193 = vmatprep.subr.bf16.mxu0 0
    %194 = vmatpush1.bf16.xpose.msra.mxu0 0
    %195 = vmatprep.subr.bf16.mxu0 0
    %196 = vmatpush1.bf16.xpose.msra.mxu0 0
    %197 = vmatprep.subr.bf16.mxu0 0
    %198 = vmatpush1.bf16.xpose.msra.mxu0 0
    %199 = vmatprep.subr.bf16.mxu0 0
    %200 = vmatpush1.bf16.xpose.msra.mxu0 0
    %201 = vmatprep.subr.bf16.mxu0 0
    %202 = vmatpush1.bf16.xpose.msra.mxu0 %v185
    %203 = vmatprep.subr.bf16.mxu0 0
    %204 = vmatpush2.bf16.xpose.msra.mxu0 0
    %205 = vmatprep.subr.bf16.mxu0 0
    %206 = vmatpush2.bf16.xpose.msra.mxu0 0
    %207 = vmatprep.subr.bf16.mxu0 0
    %208 = vmatpush2.bf16.xpose.msra.mxu0 0
    %209 = vmatprep.subr.bf16.mxu0 0
    %210 = vmatpush2.bf16.xpose.msra.mxu0 0
    %211 = vmatprep.subr.bf16.mxu0 0
    %212 = vmatpush2.bf16.xpose.msra.mxu0 0
    %213 = vmatprep.subr.bf16.mxu0 0
    %214 = vmatpush2.bf16.xpose.msra.mxu0 0
    %215 = vmatprep.subr.bf16.mxu0 0
    %216 = vmatpush2.bf16.xpose.msra.mxu0 0
    %217 = vmatprep.subr.bf16.mxu0 0
    %218 = vmatpush2.bf16.xpose.msra.mxu0 0
    %219 = vmatprep.mubr.bf16.mxu0 0
    %220 = vmatmul.mubr.bf16.gmra.mxu0 %v182
    %v221 = vpop.f32.mrf.mxu0
    %v222 = vadd.f32 %v175, %v221
    %v223 = vpop.f32.mrf.mxu0
    %v224 = vpop.f32.mrf.mxu0
    %v225 = vadd.f32 %v176, %v224
    %v226 = vpop.f32.mrf.mxu0
    %227 = vdwg.mxu0
    %229 = vrot.lane.b32.xlu0 %v174, 96
    %v230 = vpop.permute.xlu0 %229
    %v232 = vsel %vm180, %v174, 0
    %v235 = vsel %vm180, %v230, 0
    %237 = vmatprep.subr.bf16.mxu0 0
    %238 = vmatpush1.bf16.xpose.msra.mxu0 0
    %239 = vmatprep.subr.bf16.mxu0 0
    %240 = vmatpush1.bf16.xpose.msra.mxu0 0
    %241 = vmatprep.subr.bf16.mxu0 0
    %242 = vmatpush1.bf16.xpose.msra.mxu0 0
    %243 = vmatprep.subr.bf16.mxu0 0
    %244 = vmatpush1.bf16.xpose.msra.mxu0 0
    %245 = vmatprep.subr.bf16.mxu0 0
    %246 = vmatpush1.bf16.xpose.msra.mxu0 0
    %247 = vmatprep.subr.bf16.mxu0 0
    %248 = vmatpush1.bf16.xpose.msra.mxu0 0
    %249 = vmatprep.subr.bf16.mxu0 0
    %250 = vmatpush1.bf16.xpose.msra.mxu0 0
    %251 = vmatprep.subr.bf16.mxu0 0
    %252 = vmatpush1.bf16.xpose.msra.mxu0 %v235
    %253 = vmatprep.subr.bf16.mxu0 0
    %254 = vmatpush2.bf16.xpose.msra.mxu0 0
    %255 = vmatprep.subr.bf16.mxu0 0
    %256 = vmatpush2.bf16.xpose.msra.mxu0 0
    %257 = vmatprep.subr.bf16.mxu0 0
    %258 = vmatpush2.bf16.xpose.msra.mxu0 0
    %259 = vmatprep.subr.bf16.mxu0 0
    %260 = vmatpush2.bf16.xpose.msra.mxu0 0
    %261 = vmatprep.subr.bf16.mxu0 0
    %262 = vmatpush2.bf16.xpose.msra.mxu0 0
    %263 = vmatprep.subr.bf16.mxu0 0
    %264 = vmatpush2.bf16.xpose.msra.mxu0 0
    %265 = vmatprep.subr.bf16.mxu0 0
    %266 = vmatpush2.bf16.xpose.msra.mxu0 0
    %267 = vmatprep.subr.bf16.mxu0 0
    %268 = vmatpush2.bf16.xpose.msra.mxu0 0
    %269 = vmatprep.mubr.bf16.mxu0 0
    %270 = vmatmul.mubr.bf16.gmra.mxu0 %v232
    %v271 = vpop.f32.mrf.mxu0
    %v272 = vadd.f32 %v175, %v271
    %v273 = vpop.f32.mrf.mxu0
    %v274 = vpop.f32.mrf.mxu0
    %v275 = vadd.f32 %v176, %v274
    %v276 = vpop.f32.mrf.mxu0
    %277 = vdwg.mxu0
    %vm278 = vcmask 130048
    %v279 = vsel %vm278, %v222, -inf
    %280 = vmax.xlane.f32.xlu0 %v279
    %v281 = vpop.xlane.xlu0 %280
    %v282 = vsel %vm278, %v225, -inf
    %283 = vmax.xlane.f32.xlu0 %v282
    %v284 = vpop.xlane.xlu0 %283
    %v285 = vsel %vm278, %v272, -inf
    %286 = vmax.xlane.f32.xlu0 %v285
    %v287 = vpop.xlane.xlu0 %286
    %v288 = vsel %vm278, %v275, -inf
    %289 = vmax.xlane.f32.xlu0 %v288
    %v290 = vpop.xlane.xlu0 %289
    %v291 = vsub.f32 %v222, %v281
    %v292 = vsub.f32 %v225, %v284
    %v293 = vsub.f32 %v272, %v287
    %v294 = vsub.f32 %v275, %v290
    %v295 = vmul.f32 %v291, 1.442695
    %v296 = vpow.pop %v295
    %v297 = vmul.f32 %v292, 1.442695
    %v298 = vpow.pop %v297
    %v299 = vmul.f32 %v293, 1.442695
    %v300 = vpow.pop %v299
    %v301 = vmul.f32 %v294, 1.442695
    %v302 = vpow.pop %v301
    %v303 = vsel %vm278, %v296, 0.0
    %304 = vadd.xlane.f32.xlu0 %v303
    %v305 = vpop.xlane.xlu0 %304
    %v306 = vsel %vm278, %v298, 0.0
    %307 = vadd.xlane.f32.xlu0 %v306
    %v308 = vpop.xlane.xlu0 %307
    %v309 = vsel %vm278, %v300, 0.0
    %310 = vadd.xlane.f32.xlu0 %v309
    %v311 = vpop.xlane.xlu0 %310
    %v312 = vsel %vm278, %v302, 0.0
    %313 = vadd.xlane.f32.xlu0 %v312
    %v314 = vpop.xlane.xlu0 %313
    %v315 = vrcp.pop %v305
    %v316 = vrcp.pop %v308
    %v317 = vrcp.pop %v311
    %v318 = vrcp.pop %v314
    %v319 = vmul.f32 %v296, %v315
    %v320 = vmul.f32 %v298, %v316
    %v321 = vmul.f32 %v300, %v317
    %v322 = vmul.f32 %v302, %v318
    %v323 = vpack.c.bf16 %v320, %v319
    %v324 = vpack.c.bf16 %v322, %v321
    %325 = vrot.lane.b32.xlu0 %v173, 64
    %v326 = vpop.permute.xlu0 %325
    %v329 = vsel %vm278, %v323, 0
    %331 = vmatprep.subr.bf16.mxu0 0
    %332 = vmatpush1.bf16.msra.mxu0 0
    %333 = vmatprep.subr.bf16.mxu0 0
    %334 = vmatpush1.bf16.msra.mxu0 0
    %335 = vmatprep.subr.bf16.mxu0 0
    %336 = vmatpush1.bf16.msra.mxu0 0
    %337 = vmatprep.subr.bf16.mxu0 0
    %338 = vmatpush1.bf16.msra.mxu0 0
    %339 = vmatprep.subr.bf16.mxu0 0
    %340 = vmatpush1.bf16.msra.mxu0 0
    %341 = vmatprep.subr.bf16.mxu0 0
    %342 = vmatpush1.bf16.msra.mxu0 0
    %343 = vmatprep.subr.bf16.mxu0 0
    %344 = vmatpush1.bf16.msra.mxu0 0
    %345 = vmatprep.subr.bf16.mxu0 0
    %346 = vmatpush1.bf16.msra.mxu0 %v326
    %347 = vmatprep.subr.bf16.mxu0 0
    %348 = vmatpush2.bf16.msra.mxu0 0
    %349 = vmatprep.subr.bf16.mxu0 0
    %350 = vmatpush2.bf16.msra.mxu0 0
    %351 = vmatprep.subr.bf16.mxu0 0
    %352 = vmatpush2.bf16.msra.mxu0 0
    %353 = vmatprep.subr.bf16.mxu0 0
    %354 = vmatpush2.bf16.msra.mxu0 0
    %355 = vmatprep.subr.bf16.mxu0 0
    %356 = vmatpush2.bf16.msra.mxu0 0
    %357 = vmatprep.subr.bf16.mxu0 0
    %358 = vmatpush2.bf16.msra.mxu0 0
    %359 = vmatprep.subr.bf16.mxu0 0
    %360 = vmatpush2.bf16.msra.mxu0 0
    %361 = vmatprep.subr.bf16.mxu0 0
    %362 = vmatpush2.bf16.msra.mxu0 0
    %363 = vmatprep.mubr.bf16.mxu0 0
    %364 = vmatmul.mubr.bf16.gmra.mxu0 %v329
    %v365 = vpop.f32.mrf.mxu0
    %v366 = vadd.f32 0.0, %v365
    %v367 = vpop.f32.mrf.mxu0
    %v368 = vpop.f32.mrf.mxu0
    %v369 = vadd.f32 0.0, %v368
    %v370 = vpop.f32.mrf.mxu0
    %371 = vdwg.mxu0
    %372 = vrot.lane.b32.xlu0 %v174, 64
    %v373 = vpop.permute.xlu0 %372
    %v376 = vsel %vm278, %v324, 0
    %378 = vmatprep.subr.bf16.mxu0 0
    %379 = vmatpush1.bf16.msra.mxu0 0
    %380 = vmatprep.subr.bf16.mxu0 0
    %381 = vmatpush1.bf16.msra.mxu0 0
    %382 = vmatprep.subr.bf16.mxu0 0
    %383 = vmatpush1.bf16.msra.mxu0 0
    %384 = vmatprep.subr.bf16.mxu0 0
    %385 = vmatpush1.bf16.msra.mxu0 0
    %386 = vmatprep.subr.bf16.mxu0 0
    %387 = vmatpush1.bf16.msra.mxu0 0
    %388 = vmatprep.subr.bf16.mxu0 0
    %389 = vmatpush1.bf16.msra.mxu0 0
    %390 = vmatprep.subr.bf16.mxu0 0
    %391 = vmatpush1.bf16.msra.mxu0 0
    %392 = vmatprep.subr.bf16.mxu0 0
    %393 = vmatpush1.bf16.msra.mxu0 %v373
    %394 = vmatprep.subr.bf16.mxu0 0
    %395 = vmatpush2.bf16.msra.mxu0 0
    %396 = vmatprep.subr.bf16.mxu0 0
    %397 = vmatpush2.bf16.msra.mxu0 0
    %398 = vmatprep.subr.bf16.mxu0 0
    %399 = vmatpush2.bf16.msra.mxu0 0
    %400 = vmatprep.subr.bf16.mxu0 0
    %401 = vmatpush2.bf16.msra.mxu0 0
    %402 = vmatprep.subr.bf16.mxu0 0
    %403 = vmatpush2.bf16.msra.mxu0 0
    %404 = vmatprep.subr.bf16.mxu0 0
    %405 = vmatpush2.bf16.msra.mxu0 0
    %406 = vmatprep.subr.bf16.mxu0 0
    %407 = vmatpush2.bf16.msra.mxu0 0
    %408 = vmatprep.subr.bf16.mxu0 0
    %409 = vmatpush2.bf16.msra.mxu0 0
    %410 = vmatprep.mubr.bf16.mxu0 0
    %411 = vmatmul.mubr.bf16.gmra.mxu0 %v376
    %v412 = vpop.f32.mrf.mxu0
    %v413 = vadd.f32 0.0, %v412
    %v414 = vpop.f32.mrf.mxu0
    %v415 = vpop.f32.mrf.mxu0
    %v416 = vadd.f32 0.0, %v415
    %v417 = vpop.f32.mrf.mxu0
    %418 = vdwg.mxu0
    %s419 = scalar_lea.vmem [#allocation8], 16
    %v420 = vld [vmem:[%s419] sm:$0xff]
    %v421 = vld [vmem:[%s419 + $0x8] sm:$0xff]
    %422 = vrot.lane.b32.xlu0 %v173, 120
    %v423 = vpop.permute.xlu0 %422
    %424 = vrot.lane.b32.xlu0 %v173, 88
    %v425 = vpop.permute.xlu0 %424
    %v427 = vsel %vm180, %v423, 0
    %v430 = vsel %vm180, %v425, 0
    %432 = vmatprep.subr.bf16.mxu0 0
    %433 = vmatpush1.bf16.xpose.msra.mxu0 0
    %434 = vmatprep.subr.bf16.mxu0 0
    %435 = vmatpush1.bf16.xpose.msra.mxu0 0
    %436 = vmatprep.subr.bf16.mxu0 0
    %437 = vmatpush1.bf16.xpose.msra.mxu0 0
    %438 = vmatprep.subr.bf16.mxu0 0
    %439 = vmatpush1.bf16.xpose.msra.mxu0 0
    %440 = vmatprep.subr.bf16.mxu0 0
    %441 = vmatpush1.bf16.xpose.msra.mxu0 0
    %442 = vmatprep.subr.bf16.mxu0 0
    %443 = vmatpush1.bf16.xpose.msra.mxu0 0
    %444 = vmatprep.subr.bf16.mxu0 0
    %445 = vmatpush1.bf16.xpose.msra.mxu0 0
    %446 = vmatprep.subr.bf16.mxu0 0
    %447 = vmatpush1.bf16.xpose.msra.mxu0 %v430
    %448 = vmatprep.subr.bf16.mxu0 0
    %449 = vmatpush2.bf16.xpose.msra.mxu0 0
    %450 = vmatprep.subr.bf16.mxu0 0
    %451 = vmatpush2.bf16.xpose.msra.mxu0 0
    %452 = vmatprep.subr.bf16.mxu0 0
    %453 = vmatpush2.bf16.xpose.msra.mxu0 0
    %454 = vmatprep.subr.bf16.mxu0 0
    %455 = vmatpush2.bf16.xpose.msra.mxu0 0
    %456 = vmatprep.subr.bf16.mxu0 0
    %457 = vmatpush2.bf16.xpose.msra.mxu0 0
    %458 = vmatprep.subr.bf16.mxu0 0
    %459 = vmatpush2.bf16.xpose.msra.mxu0 0
    %460 = vmatprep.subr.bf16.mxu0 0
    %461 = vmatpush2.bf16.xpose.msra.mxu0 0
    %462 = vmatprep.subr.bf16.mxu0 0
    %463 = vmatpush2.bf16.xpose.msra.mxu0 0
    %464 = vmatprep.mubr.bf16.mxu0 0
    %465 = vmatmul.mubr.bf16.gmra.mxu0 %v427
    %v466 = vpop.f32.mrf.mxu0
    %v467 = vadd.f32 %v420, %v466
    %v468 = vpop.f32.mrf.mxu0
    %v469 = vpop.f32.mrf.mxu0
    %v470 = vadd.f32 %v421, %v469
    %v471 = vpop.f32.mrf.mxu0
    %472 = vdwg.mxu0
    %473 = vrot.lane.b32.xlu0 %v174, 120
    %v474 = vpop.permute.xlu0 %473
    %475 = vrot.lane.b32.xlu0 %v174, 88
    %v476 = vpop.permute.xlu0 %475
    %v478 = vsel %vm180, %v474, 0
    %v481 = vsel %vm180, %v476, 0
    %483 = vmatprep.subr.bf16.mxu0 0
    %484 = vmatpush1.bf16.xpose.msra.mxu0 0
    %485 = vmatprep.subr.bf16.mxu0 0
    %486 = vmatpush1.bf16.xpose.msra.mxu0 0
    %487 = vmatprep.subr.bf16.mxu0 0
    %488 = vmatpush1.bf16.xpose.msra.mxu0 0
    %489 = vmatprep.subr.bf16.mxu0 0
    %490 = vmatpush1.bf16.xpose.msra.mxu0 0
    %491 = vmatprep.subr.bf16.mxu0 0
    %492 = vmatpush1.bf16.xpose.msra.mxu0 0
    %493 = vmatprep.subr.bf16.mxu0 0
    %494 = vmatpush1.bf16.xpose.msra.mxu0 0
    %495 = vmatprep.subr.bf16.mxu0 0
    %496 = vmatpush1.bf16.xpose.msra.mxu0 0
    %497 = vmatprep.subr.bf16.mxu0 0
    %498 = vmatpush1.bf16.xpose.msra.mxu0 %v481
    %499 = vmatprep.subr.bf16.mxu0 0
    %500 = vmatpush2.bf16.xpose.msra.mxu0 0
    %501 = vmatprep.subr.bf16.mxu0 0
    %502 = vmatpush2.bf16.xpose.msra.mxu0 0
    %503 = vmatprep.subr.bf16.mxu0 0
    %504 = vmatpush2.bf16.xpose.msra.mxu0 0
    %505 = vmatprep.subr.bf16.mxu0 0
    %506 = vmatpush2.bf16.xpose.msra.mxu0 0
    %507 = vmatprep.subr.bf16.mxu0 0
    %508 = vmatpush2.bf16.xpose.msra.mxu0 0
    %509 = vmatprep.subr.bf16.mxu0 0
    %510 = vmatpush2.bf16.xpose.msra.mxu0 0
    %511 = vmatprep.subr.bf16.mxu0 0
    %512 = vmatpush2.bf16.xpose.msra.mxu0 0
    %513 = vmatprep.subr.bf16.mxu0 0
    %514 = vmatpush2.bf16.xpose.msra.mxu0 0
    %515 = vmatprep.mubr.bf16.mxu0 0
    %516 = vmatmul.mubr.bf16.gmra.mxu0 %v478
    %v517 = vpop.f32.mrf.mxu0
    %v518 = vadd.f32 %v420, %v517
    %v519 = vpop.f32.mrf.mxu0
    %v520 = vpop.f32.mrf.mxu0
    %v521 = vadd.f32 %v421, %v520
    %v522 = vpop.f32.mrf.mxu0
    %523 = vdwg.mxu0
    %v524 = vsel %vm278, %v467, -inf
    %525 = vmax.xlane.f32.xlu0 %v524
    %v526 = vpop.xlane.xlu0 %525
    %v527 = vsel %vm278, %v470, -inf
    %528 = vmax.xlane.f32.xlu0 %v527
    %v529 = vpop.xlane.xlu0 %528
    %v530 = vsel %vm278, %v518, -inf
    %531 = vmax.xlane.f32.xlu0 %v530
    %v532 = vpop.xlane.xlu0 %531
    %v533 = vsel %vm278, %v521, -inf
    %534 = vmax.xlane.f32.xlu0 %v533
    %v535 = vpop.xlane.xlu0 %534
    %v536 = vsub.f32 %v467, %v526
    %v537 = vsub.f32 %v470, %v529
    %v538 = vsub.f32 %v518, %v532
    %v539 = vsub.f32 %v521, %v535
    %v540 = vmul.f32 %v536, 1.442695
    %v541 = vpow.pop %v540
    %v542 = vmul.f32 %v537, 1.442695
    %v543 = vpow.pop %v542
    %v544 = vmul.f32 %v538, 1.442695
    %v545 = vpow.pop %v544
    %v546 = vmul.f32 %v539, 1.442695
    %v547 = vpow.pop %v546
    %v548 = vsel %vm278, %v541, 0.0
    %549 = vadd.xlane.f32.xlu0 %v548
    %v550 = vpop.xlane.xlu0 %549
    %v551 = vsel %vm278, %v543, 0.0
    %552 = vadd.xlane.f32.xlu0 %v551
    %v553 = vpop.xlane.xlu0 %552
    %v554 = vsel %vm278, %v545, 0.0
    %555 = vadd.xlane.f32.xlu0 %v554
    %v556 = vpop.xlane.xlu0 %555
    %v557 = vsel %vm278, %v547, 0.0
    %558 = vadd.xlane.f32.xlu0 %v557
    %v559 = vpop.xlane.xlu0 %558
    %v560 = vrcp.pop %v550
    %v561 = vrcp.pop %v553
    %v562 = vrcp.pop %v556
    %v563 = vrcp.pop %v559
    %v564 = vmul.f32 %v541, %v560
    %v565 = vmul.f32 %v543, %v561
    %v566 = vmul.f32 %v545, %v562
    %v567 = vmul.f32 %v547, %v563
    %v568 = vpack.c.bf16 %v565, %v564
    %v569 = vpack.c.bf16 %v567, %v566
    %570 = vrot.lane.b32.xlu0 %v173, 56
    %v571 = vpop.permute.xlu0 %570
    %v574 = vsel %vm278, %v568, 0
    %576 = vmatprep.subr.bf16.mxu0 0
    %577 = vmatpush1.bf16.msra.mxu0 0
    %578 = vmatprep.subr.bf16.mxu0 0
    %579 = vmatpush1.bf16.msra.mxu0 0
    %580 = vmatprep.subr.bf16.mxu0 0
    %581 = vmatpush1.bf16.msra.mxu0 0
    %582 = vmatprep.subr.bf16.mxu0 0
    %583 = vmatpush1.bf16.msra.mxu0 0
    %584 = vmatprep.subr.bf16.mxu0 0
    %585 = vmatpush1.bf16.msra.mxu0 0
    %586 = vmatprep.subr.bf16.mxu0 0
    %587 = vmatpush1.bf16.msra.mxu0 0
    %588 = vmatprep.subr.bf16.mxu0 0
    %589 = vmatpush1.bf16.msra.mxu0 0
    %590 = vmatprep.subr.bf16.mxu0 0
    %591 = vmatpush1.bf16.msra.mxu0 %v571
    %592 = vmatprep.subr.bf16.mxu0 0
    %593 = vmatpush2.bf16.msra.mxu0 0
    %594 = vmatprep.subr.bf16.mxu0 0
    %595 = vmatpush2.bf16.msra.mxu0 0
    %596 = vmatprep.subr.bf16.mxu0 0
    %597 = vmatpush2.bf16.msra.mxu0 0
    %598 = vmatprep.subr.bf16.mxu0 0
    %599 = vmatpush2.bf16.msra.mxu0 0
    %600 = vmatprep.subr.bf16.mxu0 0
    %601 = vmatpush2.bf16.msra.mxu0 0
    %602 = vmatprep.subr.bf16.mxu0 0
    %603 = vmatpush2.bf16.msra.mxu0 0
    %604 = vmatprep.subr.bf16.mxu0 0
    %605 = vmatpush2.bf16.msra.mxu0 0
    %606 = vmatprep.subr.bf16.mxu0 0
    %607 = vmatpush2.bf16.msra.mxu0 0
    %608 = vmatprep.mubr.bf16.mxu0 0
    %609 = vmatmul.mubr.bf16.gmra.mxu0 %v574
    %v610 = vpop.f32.mrf.mxu0
    %v611 = vadd.f32 0.0, %v610
    %v612 = vpop.f32.mrf.mxu0
    %v613 = vpop.f32.mrf.mxu0
    %v614 = vadd.f32 0.0, %v613
    %v615 = vpop.f32.mrf.mxu0
    %616 = vdwg.mxu0
    %617 = vrot.lane.b32.xlu0 %v174, 56
    %v618 = vpop.permute.xlu0 %617
    %v621 = vsel %vm278, %v569, 0
    %623 = vmatprep.subr.bf16.mxu0 0
    %624 = vmatpush1.bf16.msra.mxu0 0
    %625 = vmatprep.subr.bf16.mxu0 0
    %626 = vmatpush1.bf16.msra.mxu0 0
    %627 = vmatprep.subr.bf16.mxu0 0
    %628 = vmatpush1.bf16.msra.mxu0 0
    %629 = vmatprep.subr.bf16.mxu0 0
    %630 = vmatpush1.bf16.msra.mxu0 0
    %631 = vmatprep.subr.bf16.mxu0 0
    %632 = vmatpush1.bf16.msra.mxu0 0
    %633 = vmatprep.subr.bf16.mxu0 0
    %634 = vmatpush1.bf16.msra.mxu0 0
    %635 = vmatprep.subr.bf16.mxu0 0
    %636 = vmatpush1.bf16.msra.mxu0 0
    %637 = vmatprep.subr.bf16.mxu0 0
    %638 = vmatpush1.bf16.msra.mxu0 %v618
    %639 = vmatprep.subr.bf16.mxu0 0
    %640 = vmatpush2.bf16.msra.mxu0 0
    %641 = vmatprep.subr.bf16.mxu0 0
    %642 = vmatpush2.bf16.msra.mxu0 0
    %643 = vmatprep.subr.bf16.mxu0 0
    %644 = vmatpush2.bf16.msra.mxu0 0
    %645 = vmatprep.subr.bf16.mxu0 0
    %646 = vmatpush2.bf16.msra.mxu0 0
    %647 = vmatprep.subr.bf16.mxu0 0
    %648 = vmatpush2.bf16.msra.mxu0 0
    %649 = vmatprep.subr.bf16.mxu0 0
    %650 = vmatpush2.bf16.msra.mxu0 0
    %651 = vmatprep.subr.bf16.mxu0 0
    %652 = vmatpush2.bf16.msra.mxu0 0
    %653 = vmatprep.subr.bf16.mxu0 0
    %654 = vmatpush2.bf16.msra.mxu0 0
    %655 = vmatprep.mubr.bf16.mxu0 0
    %656 = vmatmul.mubr.bf16.gmra.mxu0 %v621
    %v657 = vpop.f32.mrf.mxu0
    %v658 = vadd.f32 0.0, %v657
    %v659 = vpop.f32.mrf.mxu0
    %v660 = vpop.f32.mrf.mxu0
    %v661 = vadd.f32 0.0, %v660
    %v662 = vpop.f32.mrf.mxu0
    %663 = vdwg.mxu0
    %s664 = scalar_lea.vmem [#allocation8], 32
    %v665 = vld [vmem:[%s664] sm:$0xff]
    %v666 = vld [vmem:[%s664 + $0x8] sm:$0xff]
    %667 = vrot.lane.b32.xlu0 %v173, 112
    %v668 = vpop.permute.xlu0 %667
    %669 = vrot.lane.b32.xlu0 %v173, 80
    %v670 = vpop.permute.xlu0 %669
    %v672 = vsel %vm180, %v668, 0
    %v675 = vsel %vm180, %v670, 0
    %677 = vmatprep.subr.bf16.mxu0 0
    %678 = vmatpush1.bf16.xpose.msra.mxu0 0
    %679 = vmatprep.subr.bf16.mxu0 0
    %680 = vmatpush1.bf16.xpose.msra.mxu0 0
    %681 = vmatprep.subr.bf16.mxu0 0
    %682 = vmatpush1.bf16.xpose.msra.mxu0 0
    %683 = vmatprep.subr.bf16.mxu0 0
    %684 = vmatpush1.bf16.xpose.msra.mxu0 0
    %685 = vmatprep.subr.bf16.mxu0 0
    %686 = vmatpush1.bf16.xpose.msra.mxu0 0
    %687 = vmatprep.subr.bf16.mxu0 0
    %688 = vmatpush1.bf16.xpose.msra.mxu0 0
    %689 = vmatprep.subr.bf16.mxu0 0
    %690 = vmatpush1.bf16.xpose.msra.mxu0 0
    %691 = vmatprep.subr.bf16.mxu0 0
    %692 = vmatpush1.bf16.xpose.msra.mxu0 %v675
    %693 = vmatprep.subr.bf16.mxu0 0
    %694 = vmatpush2.bf16.xpose.msra.mxu0 0
    %695 = vmatprep.subr.bf16.mxu0 0
    %696 = vmatpush2.bf16.xpose.msra.mxu0 0
    %697 = vmatprep.subr.bf16.mxu0 0
    %698 = vmatpush2.bf16.xpose.msra.mxu0 0
    %699 = vmatprep.subr.bf16.mxu0 0
    %700 = vmatpush2.bf16.xpose.msra.mxu0 0
    %701 = vmatprep.subr.bf16.mxu0 0
    %702 = vmatpush2.bf16.xpose.msra.mxu0 0
    %703 = vmatprep.subr.bf16.mxu0 0
    %704 = vmatpush2.bf16.xpose.msra.mxu0 0
    %705 = vmatprep.subr.bf16.mxu0 0
    %706 = vmatpush2.bf16.xpose.msra.mxu0 0
    %707 = vmatprep.subr.bf16.mxu0 0
    %708 = vmatpush2.bf16.xpose.msra.mxu0 0
    %709 = vmatprep.mubr.bf16.mxu0 0
    %710 = vmatmul.mubr.bf16.gmra.mxu0 %v672
    %v711 = vpop.f32.mrf.mxu0
    %v712 = vadd.f32 %v665, %v711
    %v713 = vpop.f32.mrf.mxu0
    %v714 = vpop.f32.mrf.mxu0
    %v715 = vadd.f32 %v666, %v714
    %v716 = vpop.f32.mrf.mxu0
    %717 = vdwg.mxu0
    %718 = vrot.lane.b32.xlu0 %v174, 112
    %v719 = vpop.permute.xlu0 %718
    %720 = vrot.lane.b32.xlu0 %v174, 80
    %v721 = vpop.permute.xlu0 %720
    %v723 = vsel %vm180, %v719, 0
    %v726 = vsel %vm180, %v721, 0
    %728 = vmatprep.subr.bf16.mxu0 0
    %729 = vmatpush1.bf16.xpose.msra.mxu0 0
    %730 = vmatprep.subr.bf16.mxu0 0
    %731 = vmatpush1.bf16.xpose.msra.mxu0 0
    %732 = vmatprep.subr.bf16.mxu0 0
    %733 = vmatpush1.bf16.xpose.msra.mxu0 0
    %734 = vmatprep.subr.bf16.mxu0 0
    %735 = vmatpush1.bf16.xpose.msra.mxu0 0
    %736 = vmatprep.subr.bf16.mxu0 0
    %737 = vmatpush1.bf16.xpose.msra.mxu0 0
    %738 = vmatprep.subr.bf16.mxu0 0
    %739 = vmatpush1.bf16.xpose.msra.mxu0 0
    %740 = vmatprep.subr.bf16.mxu0 0
    %741 = vmatpush1.bf16.xpose.msra.mxu0 0
    %742 = vmatprep.subr.bf16.mxu0 0
    %743 = vmatpush1.bf16.xpose.msra.mxu0 %v726
    %744 = vmatprep.subr.bf16.mxu0 0
    %745 = vmatpush2.bf16.xpose.msra.mxu0 0
    %746 = vmatprep.subr.bf16.mxu0 0
    %747 = vmatpush2.bf16.xpose.msra.mxu0 0
    %748 = vmatprep.subr.bf16.mxu0 0
    %749 = vmatpush2.bf16.xpose.msra.mxu0 0
    %750 = vmatprep.subr.bf16.mxu0 0
    %751 = vmatpush2.bf16.xpose.msra.mxu0 0
    %752 = vmatprep.subr.bf16.mxu0 0
    %753 = vmatpush2.bf16.xpose.msra.mxu0 0
    %754 = vmatprep.subr.bf16.mxu0 0
    %755 = vmatpush2.bf16.xpose.msra.mxu0 0
    %756 = vmatprep.subr.bf16.mxu0 0
    %757 = vmatpush2.bf16.xpose.msra.mxu0 0
    %758 = vmatprep.subr.bf16.mxu0 0
    %759 = vmatpush2.bf16.xpose.msra.mxu0 0
    %760 = vmatprep.mubr.bf16.mxu0 0
    %761 = vmatmul.mubr.bf16.gmra.mxu0 %v723
    %v762 = vpop.f32.mrf.mxu0
    %v763 = vadd.f32 %v665, %v762
    %v764 = vpop.f32.mrf.mxu0
    %v765 = vpop.f32.mrf.mxu0
    %v766 = vadd.f32 %v666, %v765
    %v767 = vpop.f32.mrf.mxu0
    %768 = vdwg.mxu0
    %v769 = vsel %vm278, %v712, -inf
    %770 = vmax.xlane.f32.xlu0 %v769
    %v771 = vpop.xlane.xlu0 %770
    %v772 = vsel %vm278, %v715, -inf
    %773 = vmax.xlane.f32.xlu0 %v772
    %v774 = vpop.xlane.xlu0 %773
    %v775 = vsel %vm278, %v763, -inf
    %776 = vmax.xlane.f32.xlu0 %v775
    %v777 = vpop.xlane.xlu0 %776
    %v778 = vsel %vm278, %v766, -inf
    %779 = vmax.xlane.f32.xlu0 %v778
    %v780 = vpop.xlane.xlu0 %779
    %v781 = vsub.f32 %v712, %v771
    %v782 = vsub.f32 %v715, %v774
    %v783 = vsub.f32 %v763, %v777
    %v784 = vsub.f32 %v766, %v780
    %v785 = vmul.f32 %v781, 1.442695
    %v786 = vpow.pop %v785
    %v787 = vmul.f32 %v782, 1.442695
    %v788 = vpow.pop %v787
    %v789 = vmul.f32 %v783, 1.442695
    %v790 = vpow.pop %v789
    %v791 = vmul.f32 %v784, 1.442695
    %v792 = vpow.pop %v791
    %v793 = vsel %vm278, %v786, 0.0
    %794 = vadd.xlane.f32.xlu0 %v793
    %v795 = vpop.xlane.xlu0 %794
    %v796 = vsel %vm278, %v788, 0.0
    %797 = vadd.xlane.f32.xlu0 %v796
    %v798 = vpop.xlane.xlu0 %797
    %v799 = vsel %vm278, %v790, 0.0
    %800 = vadd.xlane.f32.xlu0 %v799
    %v801 = vpop.xlane.xlu0 %800
    %v802 = vsel %vm278, %v792, 0.0
    %803 = vadd.xlane.f32.xlu0 %v802
    %v804 = vpop.xlane.xlu0 %803
    %v805 = vrcp.pop %v795
    %v806 = vrcp.pop %v798
    %v807 = vrcp.pop %v801
    %v808 = vrcp.pop %v804
    %v809 = vmul.f32 %v786, %v805
    %v810 = vmul.f32 %v788, %v806
    %v811 = vmul.f32 %v790, %v807
    %v812 = vmul.f32 %v792, %v808
    %v813 = vpack.c.bf16 %v810, %v809
    %v814 = vpack.c.bf16 %v812, %v811
    %815 = vrot.lane.b32.xlu0 %v173, 48
    %v816 = vpop.permute.xlu0 %815
    %v819 = vsel %vm278, %v813, 0
    %821 = vmatprep.subr.bf16.mxu0 0
    %822 = vmatpush1.bf16.msra.mxu0 0
    %823 = vmatprep.subr.bf16.mxu0 0
    %824 = vmatpush1.bf16.msra.mxu0 0
    %825 = vmatprep.subr.bf16.mxu0 0
    %826 = vmatpush1.bf16.msra.mxu0 0
    %827 = vmatprep.subr.bf16.mxu0 0
    %828 = vmatpush1.bf16.msra.mxu0 0
    %829 = vmatprep.subr.bf16.mxu0 0
    %830 = vmatpush1.bf16.msra.mxu0 0
    %831 = vmatprep.subr.bf16.mxu0 0
    %832 = vmatpush1.bf16.msra.mxu0 0
    %833 = vmatprep.subr.bf16.mxu0 0
    %834 = vmatpush1.bf16.msra.mxu0 0
    %835 = vmatprep.subr.bf16.mxu0 0
    %836 = vmatpush1.bf16.msra.mxu0 %v816
    %837 = vmatprep.subr.bf16.mxu0 0
    %838 = vmatpush2.bf16.msra.mxu0 0
    %839 = vmatprep.subr.bf16.mxu0 0
    %840 = vmatpush2.bf16.msra.mxu0 0
    %841 = vmatprep.subr.bf16.mxu0 0
    %842 = vmatpush2.bf16.msra.mxu0 0
    %843 = vmatprep.subr.bf16.mxu0 0
    %844 = vmatpush2.bf16.msra.mxu0 0
    %845 = vmatprep.subr.bf16.mxu0 0
    %846 = vmatpush2.bf16.msra.mxu0 0
    %847 = vmatprep.subr.bf16.mxu0 0
    %848 = vmatpush2.bf16.msra.mxu0 0
    %849 = vmatprep.subr.bf16.mxu0 0
    %850 = vmatpush2.bf16.msra.mxu0 0
    %851 = vmatprep.subr.bf16.mxu0 0
    %852 = vmatpush2.bf16.msra.mxu0 0
    %853 = vmatprep.mubr.bf16.mxu0 0
    %854 = vmatmul.mubr.bf16.gmra.mxu0 %v819
    %v855 = vpop.f32.mrf.mxu0
    %v856 = vadd.f32 0.0, %v855
    %v857 = vpop.f32.mrf.mxu0
    %v858 = vpop.f32.mrf.mxu0
    %v859 = vadd.f32 0.0, %v858
    %v860 = vpop.f32.mrf.mxu0
    %861 = vdwg.mxu0
    %862 = vrot.lane.b32.xlu0 %v174, 48
    %v863 = vpop.permute.xlu0 %862
    %v866 = vsel %vm278, %v814, 0
    %868 = vmatprep.subr.bf16.mxu0 0
    %869 = vmatpush1.bf16.msra.mxu0 0
    %870 = vmatprep.subr.bf16.mxu0 0
    %871 = vmatpush1.bf16.msra.mxu0 0
    %872 = vmatprep.subr.bf16.mxu0 0
    %873 = vmatpush1.bf16.msra.mxu0 0
    %874 = vmatprep.subr.bf16.mxu0 0
    %875 = vmatpush1.bf16.msra.mxu0 0
    %876 = vmatprep.subr.bf16.mxu0 0
    %877 = vmatpush1.bf16.msra.mxu0 0
    %878 = vmatprep.subr.bf16.mxu0 0
    %879 = vmatpush1.bf16.msra.mxu0 0
    %880 = vmatprep.subr.bf16.mxu0 0
    %881 = vmatpush1.bf16.msra.mxu0 0
    %882 = vmatprep.subr.bf16.mxu0 0
    %883 = vmatpush1.bf16.msra.mxu0 %v863
    %884 = vmatprep.subr.bf16.mxu0 0
    %885 = vmatpush2.bf16.msra.mxu0 0
    %886 = vmatprep.subr.bf16.mxu0 0
    %887 = vmatpush2.bf16.msra.mxu0 0
    %888 = vmatprep.subr.bf16.mxu0 0
    %889 = vmatpush2.bf16.msra.mxu0 0
    %890 = vmatprep.subr.bf16.mxu0 0
    %891 = vmatpush2.bf16.msra.mxu0 0
    %892 = vmatprep.subr.bf16.mxu0 0
    %893 = vmatpush2.bf16.msra.mxu0 0
    %894 = vmatprep.subr.bf16.mxu0 0
    %895 = vmatpush2.bf16.msra.mxu0 0
    %896 = vmatprep.subr.bf16.mxu0 0
    %897 = vmatpush2.bf16.msra.mxu0 0
    %898 = vmatprep.subr.bf16.mxu0 0
    %899 = vmatpush2.bf16.msra.mxu0 0
    %900 = vmatprep.mubr.bf16.mxu0 0
    %901 = vmatmul.mubr.bf16.gmra.mxu0 %v866
    %v902 = vpop.f32.mrf.mxu0
    %v903 = vadd.f32 0.0, %v902
    %v904 = vpop.f32.mrf.mxu0
    %v905 = vpop.f32.mrf.mxu0
    %v906 = vadd.f32 0.0, %v905
    %v907 = vpop.f32.mrf.mxu0
    %908 = vdwg.mxu0
    %s909 = scalar_lea.vmem [#allocation8], 48
    %v910 = vld [vmem:[%s909] sm:$0xff]
    %v911 = vld [vmem:[%s909 + $0x8] sm:$0xff]
    %912 = vrot.lane.b32.xlu0 %v173, 104
    %v913 = vpop.permute.xlu0 %912
    %914 = vrot.lane.b32.xlu0 %v173, 72
    %v915 = vpop.permute.xlu0 %914
    %v917 = vsel %vm180, %v913, 0
    %v920 = vsel %vm180, %v915, 0
    %922 = vmatprep.subr.bf16.mxu0 0
    %923 = vmatpush1.bf16.xpose.msra.mxu0 0
    %924 = vmatprep.subr.bf16.mxu0 0
    %925 = vmatpush1.bf16.xpose.msra.mxu0 0
    %926 = vmatprep.subr.bf16.mxu0 0
    %927 = vmatpush1.bf16.xpose.msra.mxu0 0
    %928 = vmatprep.subr.bf16.mxu0 0
    %929 = vmatpush1.bf16.xpose.msra.mxu0 0
    %930 = vmatprep.subr.bf16.mxu0 0
    %931 = vmatpush1.bf16.xpose.msra.mxu0 0
    %932 = vmatprep.subr.bf16.mxu0 0
    %933 = vmatpush1.bf16.xpose.msra.mxu0 0
    %934 = vmatprep.subr.bf16.mxu0 0
    %935 = vmatpush1.bf16.xpose.msra.mxu0 0
    %936 = vmatprep.subr.bf16.mxu0 0
    %937 = vmatpush1.bf16.xpose.msra.mxu0 %v920
    %938 = vmatprep.subr.bf16.mxu0 0
    %939 = vmatpush2.bf16.xpose.msra.mxu0 0
    %940 = vmatprep.subr.bf16.mxu0 0
    %941 = vmatpush2.bf16.xpose.msra.mxu0 0
    %942 = vmatprep.subr.bf16.mxu0 0
    %943 = vmatpush2.bf16.xpose.msra.mxu0 0
    %944 = vmatprep.subr.bf16.mxu0 0
    %945 = vmatpush2.bf16.xpose.msra.mxu0 0
    %946 = vmatprep.subr.bf16.mxu0 0
    %947 = vmatpush2.bf16.xpose.msra.mxu0 0
    %948 = vmatprep.subr.bf16.mxu0 0
    %949 = vmatpush2.bf16.xpose.msra.mxu0 0
    %950 = vmatprep.subr.bf16.mxu0 0
    %951 = vmatpush2.bf16.xpose.msra.mxu0 0
    %952 = vmatprep.subr.bf16.mxu0 0
    %953 = vmatpush2.bf16.xpose.msra.mxu0 0
    %954 = vmatprep.mubr.bf16.mxu0 0
    %955 = vmatmul.mubr.bf16.gmra.mxu0 %v917
    %v956 = vpop.f32.mrf.mxu0
    %v957 = vadd.f32 %v910, %v956
    %v958 = vpop.f32.mrf.mxu0
    %v959 = vpop.f32.mrf.mxu0
    %v960 = vadd.f32 %v911, %v959
    %v961 = vpop.f32.mrf.mxu0
    %962 = vdwg.mxu0
    %963 = vrot.lane.b32.xlu0 %v174, 104
    %v964 = vpop.permute.xlu0 %963
    %965 = vrot.lane.b32.xlu0 %v174, 72
    %v966 = vpop.permute.xlu0 %965
    %v968 = vsel %vm180, %v964, 0
    %v971 = vsel %vm180, %v966, 0
    %973 = vmatprep.subr.bf16.mxu0 0
    %974 = vmatpush1.bf16.xpose.msra.mxu0 0
    %975 = vmatprep.subr.bf16.mxu0 0
    %976 = vmatpush1.bf16.xpose.msra.mxu0 0
    %977 = vmatprep.subr.bf16.mxu0 0
    %978 = vmatpush1.bf16.xpose.msra.mxu0 0
    %979 = vmatprep.subr.bf16.mxu0 0
    %980 = vmatpush1.bf16.xpose.msra.mxu0 0
    %981 = vmatprep.subr.bf16.mxu0 0
    %982 = vmatpush1.bf16.xpose.msra.mxu0 0
    %983 = vmatprep.subr.bf16.mxu0 0
    %984 = vmatpush1.bf16.xpose.msra.mxu0 0
    %985 = vmatprep.subr.bf16.mxu0 0
    %986 = vmatpush1.bf16.xpose.msra.mxu0 0
    %987 = vmatprep.subr.bf16.mxu0 0
    %988 = vmatpush1.bf16.xpose.msra.mxu0 %v971
    %989 = vmatprep.subr.bf16.mxu0 0
    %990 = vmatpush2.bf16.xpose.msra.mxu0 0
    %991 = vmatprep.subr.bf16.mxu0 0
    %992 = vmatpush2.bf16.xpose.msra.mxu0 0
    %993 = vmatprep.subr.bf16.mxu0 0
    %994 = vmatpush2.bf16.xpose.msra.mxu0 0
    %995 = vmatprep.subr.bf16.mxu0 0
    %996 = vmatpush2.bf16.xpose.msra.mxu0 0
    %997 = vmatprep.subr.bf16.mxu0 0
    %998 = vmatpush2.bf16.xpose.msra.mxu0 0
    %999 = vmatprep.subr.bf16.mxu0 0
    %1000 = vmatpush2.bf16.xpose.msra.mxu0 0
    %1001 = vmatprep.subr.bf16.mxu0 0
    %1002 = vmatpush2.bf16.xpose.msra.mxu0 0
    %1003 = vmatprep.subr.bf16.mxu0 0
    %1004 = vmatpush2.bf16.xpose.msra.mxu0 0
    %1005 = vmatprep.mubr.bf16.mxu0 0
    %1006 = vmatmul.mubr.bf16.gmra.mxu0 %v968
    %v1007 = vpop.f32.mrf.mxu0
    %v1008 = vadd.f32 %v910, %v1007
    %v1009 = vpop.f32.mrf.mxu0
    %v1010 = vpop.f32.mrf.mxu0
    %v1011 = vadd.f32 %v911, %v1010
    %v1012 = vpop.f32.mrf.mxu0
    %1013 = vdwg.mxu0
    %v1014 = vsel %vm278, %v957, -inf
    %1015 = vmax.xlane.f32.xlu0 %v1014
    %v1016 = vpop.xlane.xlu0 %1015
    %v1017 = vsel %vm278, %v960, -inf
    %1018 = vmax.xlane.f32.xlu0 %v1017
    %v1019 = vpop.xlane.xlu0 %1018
    %v1020 = vsel %vm278, %v1008, -inf
    %1021 = vmax.xlane.f32.xlu0 %v1020
    %v1022 = vpop.xlane.xlu0 %1021
    %v1023 = vsel %vm278, %v1011, -inf
    %1024 = vmax.xlane.f32.xlu0 %v1023
    %v1025 = vpop.xlane.xlu0 %1024
    %v1026 = vsub.f32 %v957, %v1016
    %v1027 = vsub.f32 %v960, %v1019
    %v1028 = vsub.f32 %v1008, %v1022
    %v1029 = vsub.f32 %v1011, %v1025
    %v1030 = vmul.f32 %v1026, 1.442695
    %v1031 = vpow.pop %v1030
    %v1032 = vmul.f32 %v1027, 1.442695
    %v1033 = vpow.pop %v1032
    %v1034 = vmul.f32 %v1028, 1.442695
    %v1035 = vpow.pop %v1034
    %v1036 = vmul.f32 %v1029, 1.442695
    %v1037 = vpow.pop %v1036
    %v1038 = vsel %vm278, %v1031, 0.0
    %1039 = vadd.xlane.f32.xlu0 %v1038
    %v1040 = vpop.xlane.xlu0 %1039
    %v1041 = vsel %vm278, %v1033, 0.0
    %1042 = vadd.xlane.f32.xlu0 %v1041
    %v1043 = vpop.xlane.xlu0 %1042
    %v1044 = vsel %vm278, %v1035, 0.0
    %1045 = vadd.xlane.f32.xlu0 %v1044
    %v1046 = vpop.xlane.xlu0 %1045
    %v1047 = vsel %vm278, %v1037, 0.0
    %1048 = vadd.xlane.f32.xlu0 %v1047
    %v1049 = vpop.xlane.xlu0 %1048
    %v1050 = vrcp.pop %v1040
    %v1051 = vrcp.pop %v1043
    %v1052 = vrcp.pop %v1046
    %v1053 = vrcp.pop %v1049
    %v1054 = vmul.f32 %v1031, %v1050
    %v1055 = vmul.f32 %v1033, %v1051
    %v1056 = vmul.f32 %v1035, %v1052
    %v1057 = vmul.f32 %v1037, %v1053
    %v1058 = vpack.c.bf16 %v1055, %v1054
    %v1059 = vpack.c.bf16 %v1057, %v1056
    %1060 = vrot.lane.b32.xlu0 %v173, 40
    %v1061 = vpop.permute.xlu0 %1060
    %v1064 = vsel %vm278, %v1058, 0
    %1066 = vmatprep.subr.bf16.mxu0 0
    %1067 = vmatpush1.bf16.msra.mxu0 0
    %1068 = vmatprep.subr.bf16.mxu0 0
    %1069 = vmatpush1.bf16.msra.mxu0 0
    %1070 = vmatprep.subr.bf16.mxu0 0
    %1071 = vmatpush1.bf16.msra.mxu0 0
    %1072 = vmatprep.subr.bf16.mxu0 0
    %1073 = vmatpush1.bf16.msra.mxu0 0
    %1074 = vmatprep.subr.bf16.mxu0 0
    %1075 = vmatpush1.bf16.msra.mxu0 0
    %1076 = vmatprep.subr.bf16.mxu0 0
    %1077 = vmatpush1.bf16.msra.mxu0 0
    %1078 = vmatprep.subr.bf16.mxu0 0
    %1079 = vmatpush1.bf16.msra.mxu0 0
    %1080 = vmatprep.subr.bf16.mxu0 0
    %1081 = vmatpush1.bf16.msra.mxu0 %v1061
    %1082 = vmatprep.subr.bf16.mxu0 0
    %1083 = vmatpush2.bf16.msra.mxu0 0
    %1084 = vmatprep.subr.bf16.mxu0 0
    %1085 = vmatpush2.bf16.msra.mxu0 0
    %1086 = vmatprep.subr.bf16.mxu0 0
    %1087 = vmatpush2.bf16.msra.mxu0 0
    %1088 = vmatprep.subr.bf16.mxu0 0
    %1089 = vmatpush2.bf16.msra.mxu0 0
    %1090 = vmatprep.subr.bf16.mxu0 0
    %1091 = vmatpush2.bf16.msra.mxu0 0
    %1092 = vmatprep.subr.bf16.mxu0 0
    %1093 = vmatpush2.bf16.msra.mxu0 0
    %1094 = vmatprep.subr.bf16.mxu0 0
    %1095 = vmatpush2.bf16.msra.mxu0 0
    %1096 = vmatprep.subr.bf16.mxu0 0
    %1097 = vmatpush2.bf16.msra.mxu0 0
    %1098 = vmatprep.mubr.bf16.mxu0 0
    %1099 = vmatmul.mubr.bf16.gmra.mxu0 %v1064
    %v1100 = vpop.f32.mrf.mxu0
    %v1101 = vadd.f32 0.0, %v1100
    %v1102 = vpop.f32.mrf.mxu0
    %v1103 = vpop.f32.mrf.mxu0
    %v1104 = vadd.f32 0.0, %v1103
    %v1105 = vpop.f32.mrf.mxu0
    %1106 = vdwg.mxu0
    %1107 = vrot.lane.b32.xlu0 %v174, 40
    %v1108 = vpop.permute.xlu0 %1107
    %v1111 = vsel %vm278, %v1059, 0
    %1113 = vmatprep.subr.bf16.mxu0 0
    %1114 = vmatpush1.bf16.msra.mxu0 0
    %1115 = vmatprep.subr.bf16.mxu0 0
    %1116 = vmatpush1.bf16.msra.mxu0 0
    %1117 = vmatprep.subr.bf16.mxu0 0
    %1118 = vmatpush1.bf16.msra.mxu0 0
    %1119 = vmatprep.subr.bf16.mxu0 0
    %1120 = vmatpush1.bf16.msra.mxu0 0
    %1121 = vmatprep.subr.bf16.mxu0 0
    %1122 = vmatpush1.bf16.msra.mxu0 0
    %1123 = vmatprep.subr.bf16.mxu0 0
    %1124 = vmatpush1.bf16.msra.mxu0 0
    %1125 = vmatprep.subr.bf16.mxu0 0
    %1126 = vmatpush1.bf16.msra.mxu0 0
    %1127 = vmatprep.subr.bf16.mxu0 0
    %1128 = vmatpush1.bf16.msra.mxu0 %v1108
    %1129 = vmatprep.subr.bf16.mxu0 0
    %1130 = vmatpush2.bf16.msra.mxu0 0
    %1131 = vmatprep.subr.bf16.mxu0 0
    %1132 = vmatpush2.bf16.msra.mxu0 0
    %1133 = vmatprep.subr.bf16.mxu0 0
    %1134 = vmatpush2.bf16.msra.mxu0 0
    %1135 = vmatprep.subr.bf16.mxu0 0
    %1136 = vmatpush2.bf16.msra.mxu0 0
    %1137 = vmatprep.subr.bf16.mxu0 0
    %1138 = vmatpush2.bf16.msra.mxu0 0
    %1139 = vmatprep.subr.bf16.mxu0 0
    %1140 = vmatpush2.bf16.msra.mxu0 0
    %1141 = vmatprep.subr.bf16.mxu0 0
    %1142 = vmatpush2.bf16.msra.mxu0 0
    %1143 = vmatprep.subr.bf16.mxu0 0
    %1144 = vmatpush2.bf16.msra.mxu0 0
    %1145 = vmatprep.mubr.bf16.mxu0 0
    %1146 = vmatmul.mubr.bf16.gmra.mxu0 %v1111
    %v1147 = vpop.f32.mrf.mxu0
    %v1148 = vadd.f32 0.0, %v1147
    %v1149 = vpop.f32.mrf.mxu0
    %v1150 = vpop.f32.mrf.mxu0
    %v1151 = vadd.f32 0.0, %v1150
    %v1152 = vpop.f32.mrf.mxu0
    %1153 = vdwg.mxu0
    %1158 = vrot.lane.b32.xlu0 %v611, 8
    %v1159 = vpop.permute.xlu0 %1158
    %1160 = vrot.lane.b32.xlu0 %v614, 8
    %v1161 = vpop.permute.xlu0 %1160
    %1162 = vrot.lane.b32.xlu0 %v658, 8
    %v1163 = vpop.permute.xlu0 %1162
    %1164 = vrot.lane.b32.xlu0 %v661, 8
    %v1165 = vpop.permute.xlu0 %1164
    %1174 = vrot.lane.b32.xlu0 %v856, 16
    %v1175 = vpop.permute.xlu0 %1174
    %1176 = vrot.lane.b32.xlu0 %v859, 16
    %v1177 = vpop.permute.xlu0 %1176
    %1178 = vrot.lane.b32.xlu0 %v903, 16
    %v1179 = vpop.permute.xlu0 %1178
    %1180 = vrot.lane.b32.xlu0 %v906, 16
    %v1181 = vpop.permute.xlu0 %1180
    %1190 = vrot.lane.b32.xlu0 %v1101, 24
    %v1191 = vpop.permute.xlu0 %1190
    %1192 = vrot.lane.b32.xlu0 %v1104, 24
    %v1193 = vpop.permute.xlu0 %1192
    %1194 = vrot.lane.b32.xlu0 %v1148, 24
    %v1195 = vpop.permute.xlu0 %1194
    %1196 = vrot.lane.b32.xlu0 %v1151, 24
    %v1197 = vpop.permute.xlu0 %1196
    %v1202 = vsel %vm180, %v366, %v1159
    %v1203 = vsel %vm180, %v369, %v1161
    %v1204 = vsel %vm180, %v413, %v1163
    %v1205 = vsel %vm180, %v416, %v1165
    %v1206 = vsel %vm278, %v1202, %v1175
    %v1207 = vsel %vm278, %v1203, %v1177
    %v1208 = vsel %vm278, %v1204, %v1179
    %v1209 = vsel %vm278, %v1205, %v1181
    %vm1210 = vcmask 195584
    %v1211 = vsel %vm1210, %v1206, %v1191
    %v1212 = vsel %vm1210, %v1207, %v1193
    %v1213 = vsel %vm1210, %v1208, %v1195
    %v1214 = vsel %vm1210, %v1209, %v1197
    %v1215 = vpack.c.bf16 %v1212, %v1211
    %v1216 = vpack.c.bf16 %v1214, %v1213
    %v1217 = vld [vmem:[#allocation7] sm:$0xf]
    %v1218 = vld [vmem:[#allocation7 + $0x4] sm:$0xf]
    %v1219 = vld [vmem:[#allocation7 + $0x8] sm:$0xf]
    %v1220 = vld [vmem:[#allocation7 + $0xc] sm:$0xf]
    %v1221 = vld [vmem:[%s4] sm:$0x1]
    %v1223 = vlaneseq
    %v1224 = vshrl.u32 %v1223, 7
    %v1225 = vsub.s32 0, %v1224
    %v1226 = vrot.slane %v1221, %v1225
    %v1232 = vunpack.c.l.b16 %v1217
    %v1233 = vunpack.c.l.b16 %v1218
    %v1234 = vunpack.c.l.b16 %v1219
    %v1235 = vunpack.c.l.b16 %v1220
    %v1236 = vpack.c.b16 %v1233, %v1232
    %v1237 = vpack.c.b16 %v1235, %v1234
    %v1241 = vsel %vm117, %v1215, 0
    %v1244 = vsel %vm117, %v1216, 0
    %1246 = vmatprep.subr.bf16.mxu0 0
    %1247 = vmatpush1.bf16.msra.mxu0 0
    %1248 = vmatprep.subr.bf16.mxu0 0
    %1249 = vmatpush1.bf16.msra.mxu0 0
    %1250 = vmatprep.subr.bf16.mxu0 0
    %1251 = vmatpush1.bf16.msra.mxu0 0
    %1252 = vmatprep.subr.bf16.mxu0 0
    %1253 = vmatpush1.bf16.msra.mxu0 0
    %1254 = vmatprep.subr.bf16.mxu0 0
    %1255 = vmatpush1.bf16.msra.mxu0 0
    %1256 = vmatprep.subr.bf16.mxu0 0
    %1257 = vmatpush1.bf16.msra.mxu0 0
    %1258 = vmatprep.subr.bf16.mxu0 0
    %1259 = vmatpush1.bf16.msra.mxu0 %v1237
    %1260 = vmatprep.subr.bf16.mxu0 0
    %1261 = vmatpush1.bf16.msra.mxu0 %v1236
    %1262 = vmatprep.subr.bf16.mxu0 0
    %1263 = vmatpush2.bf16.msra.mxu0 0
    %1264 = vmatprep.subr.bf16.mxu0 0
    %1265 = vmatpush2.bf16.msra.mxu0 0
    %1266 = vmatprep.subr.bf16.mxu0 0
    %1267 = vmatpush2.bf16.msra.mxu0 0
    %1268 = vmatprep.subr.bf16.mxu0 0
    %1269 = vmatpush2.bf16.msra.mxu0 0
    %1270 = vmatprep.subr.bf16.mxu0 0
    %1271 = vmatpush2.bf16.msra.mxu0 0
    %1272 = vmatprep.subr.bf16.mxu0 0
    %1273 = vmatpush2.bf16.msra.mxu0 0
    %1274 = vmatprep.subr.bf16.mxu0 0
    %1275 = vmatpush2.bf16.msra.mxu0 0
    %1276 = vmatprep.subr.bf16.mxu0 0
    %1277 = vmatpush2.bf16.msra.mxu0 0
    %1278 = vmatprep.mubr.bf16.mxu0 0
    %1279 = vmatmul.mubr.bf16.gmra.mxu0 %v1241
    %v1280 = vpop.f32.mrf.mxu0
    %v1281 = vadd.f32 %v1226, %v1280
    %v1282 = vpop.f32.mrf.mxu0
    %v1283 = vpop.f32.mrf.mxu0
    %v1284 = vadd.f32 %v1226, %v1283
    %v1285 = vpop.f32.mrf.mxu0
    %1286 = vmatprep.mubr.bf16.mxu0 0
    %1287 = vmatmul.mubr.bf16.gmra.mxu0 %v1244
    %v1288 = vpop.f32.mrf.mxu0
    %v1289 = vadd.f32 %v1226, %v1288
    %v1290 = vpop.f32.mrf.mxu0
    %v1291 = vpop.f32.mrf.mxu0
    %v1292 = vadd.f32 %v1226, %v1291
    %v1293 = vpop.f32.mrf.mxu0
    %1294 = vdwg.mxu0
    %1295 = vst.msk [vmem:[#allocation10] sm:$0xff] %vm117, %v1281
    %1296 = vst.msk [vmem:[#allocation10 + $0x8] sm:$0xff] %vm117, %v1284
    %1297 = vst.msk [vmem:[#allocation10 + $0x10] sm:$0xff] %vm117, %v1289
    %1298 = vst.msk [vmem:[#allocation10 + $0x18] sm:$0xff] %vm117, %v1292
    // Predicated region
    $region42: #{tpu_custom_call.1} parent=1 // pred_check
      _
    $region43: #{tpu_custom_call.1} parent=1 // pred_check_branch
      %1300 = sbr.rel (0) target = $region45
    $region44: #{tpu_custom_call.1} parent=1 // pred_region
      %s1302 = ssub.s32 512, 512
      %1303 = vsyncadd [#allocation4], %s1302
      %s1304 = sshll.u32 [#allocation10], 4
      %s1305 = int_to_ptr.vmem [resolvable:$true] %s1304
      %1310 = dma.vmem_to_hbm [thread:$0]  %s1305, 512, %s6, [#allocation4], 128, 128, 8
    $region45: #{tpu_custom_call.1} parent=1 // pred_fallthru
      _
    // Predicated region
    $region46: #{tpu_custom_call.1} parent=1 // pred_check
      _
    $region47: #{tpu_custom_call.1} parent=1 // pred_check_branch
      %1312 = sbr.rel (0) target = $region49
    $region48: #{tpu_custom_call.1} parent=1 // pred_region
      %1313 = dma.done [#allocation4], 512
    $region49: #{tpu_custom_call.1} parent=1 // pred_fallthru
      _
    %1314 = vsyncpa [#allocation3], 1
    %1315 = vsyncpa [#allocation6], 1
    %1316 = vsyncpa [#allocation9], 1
    %1317 = vsyncpa [#allocation4], 1

</llo_original>
